<compile_context>
chip_gen: v6e
topology: v6e:2x2x1
jax: 0.10.0
libtpu: 0.0.40
codegen_flags: <defaults>
</compile_context>

<pallas_src>
import math
from functools import partial

import jax
import jax.numpy as jnp
from jax import lax
from jax.experimental import pallas as pl
from jax.experimental.pallas import tpu as pltpu

LN_EPS = 1e-5  # torch.nn.LayerNorm default


def _layer_norm(x, gamma, beta):
    mu = jnp.mean(x, axis=-1, keepdims=True)
    var = jnp.mean((x - mu) * (x - mu), axis=-1, keepdims=True)
    return (x - mu) * lax.rsqrt(var + LN_EPS) * gamma + beta


def encoder_layer_kernel(
    x_ref, wqkv_ref, bqkv_ref, wo_ref, w1_ref, b1_ref, w2_ref, vecs_ref,
    o_ref, ctx_ref, *, n_heads, ffn_chunk,
):
    TB, S, D = x_ref.shape
    R = TB * S
    dh = D // n_heads

    vecs = vecs_ref[...]                         # (8, D) f32 packed vectors
    bo, b2 = vecs[0:1], vecs[1:2]
    g1, be1 = vecs[2:3], vecs[3:4]
    g2, be2 = vecs[4:5], vecs[5:6]

    x2 = x_ref[...].reshape(R, D)                # (R, D) fp32 row slab
    x_bf = x2.astype(jnp.bfloat16)

    # ---- fused QKV projection for all TB*S rows (one big MXU op) -----------
    # 1/sqrt(dh) is pre-folded into the Q columns of Wqkv / bqkv at init.
    qkv = jnp.dot(x_bf, wqkv_ref[...], preferred_element_type=jnp.float32)
    qkv_bf = (qkv + bqkv_ref[...]).astype(jnp.bfloat16)     # (R, 3D), cast once

    # ---- multi-head self-attention ------------------------------------------
    # Static loop over heads (small H); the batch dimension is handled by 3-D
    # einsums (no k.T transpose).  Each head's context goes straight into its
    # 32-lane column slice of a bf16 VMEM scratch so the output projection
    # below is a single K=D matmul.
    for h in range(n_heads):
        lo = h * dh
        q3 = qkv_bf[:, lo:lo + dh].reshape(TB, S, dh)
        k3 = qkv_bf[:, D + lo:D + lo + dh].reshape(TB, S, dh)
        v3 = qkv_bf[:, 2 * D + lo:2 * D + lo + dh].reshape(TB, S, dh)

        s = jnp.einsum('bqd,bkd->bqk', q3, k3,
                       preferred_element_type=jnp.float32)   # (TB, S, S)
        s = s - jnp.max(s, axis=-1, keepdims=True)
        p = jnp.exp(s)
        # Exact softmax normalization for torch parity (deliberate choice over
        # pl.reciprocal(approx=True), which is ~free on EUP but not exact).
        p = p / jnp.sum(p, axis=-1, keepdims=True)

        ctx = jnp.einsum('bqk,bkd->bqd', p.astype(jnp.bfloat16), v3,
                         preferred_element_type=jnp.float32)  # (TB, S, dh)
        ctx_ref[:, lo:lo + dh] = ctx.reshape(R, dh).astype(jnp.bfloat16)

    # merged output projection: one (R,D)x(D,D) matmul instead of H K=dh ones.
    att = jnp.dot(ctx_ref[...], wo_ref[...],
                  preferred_element_type=jnp.float32) + bo

    # ---- residual + LayerNorm 1 (dropout = identity) ------------------------
    h1 = _layer_norm(att + x2, g1, be1)
    h1_bf = h1.astype(jnp.bfloat16)

    # ---- FeedForward: Linear -> ReLU -> Linear ------------------------------
    M = w1_ref.shape[1]
    n_chunks = M // ffn_chunk
    if n_chunks == 1:
        t = jnp.dot(h1_bf, w1_ref[...], preferred_element_type=jnp.float32)
        t = jnp.maximum(t + b1_ref[...], 0.0).astype(jnp.bfloat16)
        ff = jnp.dot(t, w2_ref[...], preferred_element_type=jnp.float32)
    else:
        # fori_loop bounds live ranges; ffn_chunk is a multiple of 128 so all
        # slices stay lane-aligned.
        def body(c, acc):
            off = pl.multiple_of(c * ffn_chunk, ffn_chunk)
            t = jnp.dot(h1_bf, w1_ref[:, pl.ds(off, ffn_chunk)],
                        preferred_element_type=jnp.float32)
            t = jnp.maximum(t + b1_ref[:, pl.ds(off, ffn_chunk)], 0.0)
            t = t.astype(jnp.bfloat16)
            return acc + jnp.dot(t, w2_ref[pl.ds(off, ffn_chunk), :],
                                 preferred_element_type=jnp.float32)
        ff = lax.fori_loop(0, n_chunks, body, jnp.zeros((R, D), jnp.float32))
    ff = ff + b2

    # ---- residual + LayerNorm 2 (dropout = identity) ------------------------
    h2 = _layer_norm(ff + h1, g2, be2)
    o_ref[...] = h2.reshape(TB, S, D).astype(o_ref.dtype)


def _vmem_limit_bytes():
    # Explicit scoped-VMEM ceiling: ~85% of physical, capped at 100 MiB
    # (v5e/v6e: 128 MiB physical; v7x: 64 MiB per TensorCore).
    try:
        cap = pltpu.get_tpu_info().vmem_capacity_bytes
    except Exception:
        cap = 64 << 20
    return int(min(cap * 0.85, 100 << 20))


def _pick_batch_block(B, S):
    """Rows per grid step >= ~256 when possible, but keep >=2 grid steps
    (v7x has 2 TensorCores) and require B % TB == 0."""
    tb = min(B, max(1, -(-256 // S)))
    while B % tb:
        tb -= 1
    if B // tb < 2 and B >= 2:
        tb = max(1, B // 2)
        while tb > 1 and B % tb:
            tb -= 1
    return max(tb, 1)


def encoder_layer(x, params, *, n_heads, batch_block=None, ffn_chunk=512):
    """x: (B, S, D) float32.  params: dict from init_params (bf16 weights)."""
    B, S, D = x.shape
    M = params["w1"].shape[1]  # mid dim = 4*D
    assert D % n_heads == 0, "model_dim must be divisible by n_heads"
    assert D % 128 == 0, "model_dim must be lane-dense (multiple of 128)"
    assert S % 8 == 0, "seq length must be a multiple of 8 (sublane tile)"
    ffn_chunk = min(ffn_chunk, M)
    assert M % ffn_chunk == 0 and ffn_chunk % 128 == 0

    TB = batch_block if batch_block is not None else _pick_batch_block(B, S)
    assert B % TB == 0

    def wspec(shape):
        # Constant index map across the grid -> single-buffer (halves residency).
        return pl.BlockSpec(shape, lambda b: (0,) * len(shape),
                            pipeline_mode=pl.Buffered(buffer_count=1))

    in_specs = [
        pl.BlockSpec((TB, S, D), lambda b: (b, 0, 0)),  # x
        wspec((D, 3 * D)),                              # Wqkv (bf16, Q cols pre-scaled)
        wspec((1, 3 * D)),                              # bqkv (f32, Q part pre-scaled)
        wspec((D, D)),                                  # Wo (bf16)
        wspec((D, M)),                                  # W1 (bf16)
        wspec((1, M)),                                  # b1 (f32)
        wspec((M, D)),                                  # W2 (bf16)
        wspec((8, D)),                                  # packed bias/LN vectors
    ]
    out_spec = pl.BlockSpec((TB, S, D), lambda b: (b, 0, 0))

    # Advisory cost estimate for XLA's scheduler.
    flops = 24 * B * S * D * D + 4 * B * S * S * D
    weight_bytes = 2 * (3 * D * D + D * D + 2 * D * M)
    bytes_accessed = 2 * 4 * B * S * D + weight_bytes
    cost = pl.CostEstimate(flops=flops,
                           transcendentals=B * n_heads * S * S,
                           bytes_accessed=bytes_accessed)

    kernel = partial(encoder_layer_kernel, n_heads=n_heads, ffn_chunk=ffn_chunk)
    return pl.pallas_call(
        kernel,
        out_shape=jax.ShapeDtypeStruct((B, S, D), x.dtype),
        grid_spec=pltpu.PrefetchScalarGridSpec(
            num_scalar_prefetch=0,
            grid=(B // TB,),
            in_specs=in_specs,
            out_specs=out_spec,
            scratch_shapes=[pltpu.VMEM((TB * S, D), jnp.bfloat16)],
        ),
        compiler_params=pltpu.CompilerParams(
            dimension_semantics=("parallel",),
            vmem_limit_bytes=_vmem_limit_bytes(),
        ),
        cost_estimate=cost,
    )(
        x,
        params["wqkv"], params["bqkv"], params["wo"],
        params["w1"], params["b1"], params["w2"],
        params["vecs"],
    )


def init_params(key, model_dim, n_heads):
    """Deterministic synthetic parameters, pre-packed for the kernel.

    Returns kernel-packed arrays plus params['raw'] with the unpacked,
    un-scaled fp32 parameters for the reference implementation."""
    D = model_dim
    M = 4 * D
    dh = D // n_heads
    scale = 1.0 / math.sqrt(dh)
    ks = jax.random.split(key, 12)

    def lin(kw, kb, din, dout):
        bound = 1.0 / math.sqrt(din)
        w = jax.random.uniform(kw, (din, dout), jnp.float32, -bound, bound)
        b = jax.random.uniform(kb, (1, dout), jnp.float32, -bound, bound)
        return w, b

    wq, bq = lin(ks[0], ks[1], D, D)
    wk, bk = lin(ks[2], ks[3], D, D)
    wv, bv = lin(ks[4], ks[5], D, D)
    wo, bo = lin(ks[6], ks[7], D, D)
    w1, b1 = lin(ks[8], ks[9], D, M)
    w2, b2 = lin(ks[10], ks[11], M, D)

    ones = jnp.ones((1, D), jnp.float32)
    zeros = jnp.zeros((1, D), jnp.float32)
    # rows: 0=bo, 1=b2, 2=ln1_g, 3=ln1_b, 4=ln2_g, 5=ln2_b, 6/7=pad
    vecs = jnp.concatenate([bo, b2, ones, zeros, ones, zeros, zeros, zeros],
                           axis=0)

    raw = dict(wq=wq, bq=bq, wk=wk, bk=bk, wv=wv, bv=bv, wo=wo, bo=bo,
               w1=w1, b1=b1, w2=w2, b2=b2,
               g1=ones, be1=zeros, g2=ones, be2=zeros)

    return dict(
        # 1/sqrt(dh) folded into the Q columns (weights AND bias): free at init.
        wqkv=jnp.concatenate([wq * scale, wk, wv], axis=1).astype(jnp.bfloat16),
        bqkv=jnp.concatenate([bq * scale, bk, bv], axis=1),
        wo=wo.astype(jnp.bfloat16),
        w1=w1.astype(jnp.bfloat16), b1=b1,
        w2=w2.astype(jnp.bfloat16),
        vecs=vecs,
        raw=raw,
    )


def encoder_layer_ref(x, raw, *, n_heads):
    """Pure-JAX mirror of the module math (standard MHA with explicit
    1/sqrt(dh) scaling and exact softmax), with bf16 matmul inputs mirrored."""
    B, S, D = x.shape
    dh = D // n_heads
    scale = 1.0 / math.sqrt(dh)
    bf = lambda a: a.astype(jnp.bfloat16)

    def one(xb):
        xb_bf = bf(xb)
        q = jnp.dot(xb_bf, bf(raw["wq"]), preferred_element_type=jnp.float32) + raw["bq"]
        k = jnp.dot(xb_bf, bf(raw["wk"]), preferred_element_type=jnp.float32) + raw["bk"]
        v = jnp.dot(xb_bf, bf(raw["wv"]), preferred_element_type=jnp.float32) + raw["bv"]
        heads = []
        for h in range(n_heads):
            lo = h * dh
            qh = bf(q[:, lo:lo + dh] * scale)
            kh = bf(k[:, lo:lo + dh])
            vh = bf(v[:, lo:lo + dh])
            s = jnp.dot(qh, kh.T, preferred_element_type=jnp.float32)
            p = jax.nn.softmax(s, axis=-1)
            heads.append(jnp.dot(bf(p), vh, preferred_element_type=jnp.float32))
        ctx = bf(jnp.concatenate(heads, axis=-1))
        att = jnp.dot(ctx, bf(raw["wo"]), preferred_element_type=jnp.float32) + raw["bo"]
        h1 = _layer_norm(att + xb, raw["g1"], raw["be1"])
        t = jnp.dot(bf(h1), bf(raw["w1"]), preferred_element_type=jnp.float32) + raw["b1"]
        t = bf(jnp.maximum(t, 0.0))
        ff = jnp.dot(t, bf(raw["w2"]), preferred_element_type=jnp.float32) + raw["b2"]
        return _layer_norm(ff + h1, raw["g2"], raw["be2"])

    return jnp.stack([one(x[b]) for b in range(B)], axis=0)


if __name__ == "__main__":
    # Small but lane-dense config: batch=4, seq=16, model_dim=128, heads=4.
    # Batch-block heuristic -> 2 batch elements (32 rows) per grid step,
    # 2 parallel grid steps (keeps both v7x TensorCores busy).
    B, S, D, H = 4, 16, 128, 4
    key = jax.random.PRNGKey(0)
    kx, kp = jax.random.split(key)
    x = jax.random.normal(kx, (B, S, D), jnp.float32)
    params = init_params(kp, D, H)

    out = encoder_layer(x, params, n_heads=H)
    jax.block_until_ready(out)

    assert out.shape == (B, S, D) and out.dtype == jnp.float32
    assert bool(jnp.all(jnp.isfinite(out)))

    ref = encoder_layer_ref(x, params["raw"], n_heads=H)
    err = float(jnp.max(jnp.abs(out - ref)))
    assert err < 3e-2, f"max abs err vs reference: {err}"
    print("KERNEL_OK")
</pallas_src>

<mosaic_0001>
module attributes {stable_mosaic.version = 11 : i64} {
  func.func @encoder_layer_kernel(%arg0: i32, %arg1: memref<2x16x128xf32, #tpu.memory_space<vmem>>, %arg2: memref<128x384xbf16, #tpu.memory_space<vmem>>, %arg3: memref<1x384xf32, #tpu.memory_space<vmem>>, %arg4: memref<128x128xbf16, #tpu.memory_space<vmem>>, %arg5: memref<128x512xbf16, #tpu.memory_space<vmem>>, %arg6: memref<1x512xf32, #tpu.memory_space<vmem>>, %arg7: memref<512x128xbf16, #tpu.memory_space<vmem>>, %arg8: memref<8x128xf32, #tpu.memory_space<vmem>>, %arg9: memref<2x16x128xf32, #tpu.memory_space<vmem>>, %arg10: memref<32x128xbf16, #tpu.memory_space<vmem>>) attributes {dimension_semantics = [#tpu.dimension_semantics<parallel>], iteration_bounds = array<i64: 2>, scalar_prefetch = 0 : i64, scratch_operands = 1 : i64, tpu.core_type = #tpu.core_type<tc>, window_params = [{transform_indices = @transform_0, window_bounds = array<i64: 2, 16, 128>}, {pipeline_mode = #tpu.pipeline_mode<synchronous>, transform_indices = @transform_1, window_bounds = array<i64: 128, 384>}, {pipeline_mode = #tpu.pipeline_mode<synchronous>, transform_indices = @transform_2, window_bounds = array<i64: 1, 384>}, {pipeline_mode = #tpu.pipeline_mode<synchronous>, transform_indices = @transform_3, window_bounds = array<i64: 128, 128>}, {pipeline_mode = #tpu.pipeline_mode<synchronous>, transform_indices = @transform_4, window_bounds = array<i64: 128, 512>}, {pipeline_mode = #tpu.pipeline_mode<synchronous>, transform_indices = @transform_5, window_bounds = array<i64: 1, 512>}, {pipeline_mode = #tpu.pipeline_mode<synchronous>, transform_indices = @transform_6, window_bounds = array<i64: 512, 128>}, {pipeline_mode = #tpu.pipeline_mode<synchronous>, transform_indices = @transform_7, window_bounds = array<i64: 8, 128>}, {transform_indices = @transform_8, window_bounds = array<i64: 2, 16, 128>}]} {
    %c0 = arith.constant 0 : index
    %c0_0 = arith.constant 0 : index
    %0 = vector.load %arg8[%c0, %c0_0] : memref<8x128xf32, #tpu.memory_space<vmem>>, vector<8x128xf32>
    %1 = vector.extract_strided_slice %0 {offsets = [0, 0], sizes = [1, 128], strides = [1, 1]} : vector<8x128xf32> to vector<1x128xf32>
    %2 = vector.extract_strided_slice %0 {offsets = [1, 0], sizes = [1, 128], strides = [1, 1]} : vector<8x128xf32> to vector<1x128xf32>
    %3 = vector.extract_strided_slice %0 {offsets = [2, 0], sizes = [1, 128], strides = [1, 1]} : vector<8x128xf32> to vector<1x128xf32>
    %4 = vector.extract_strided_slice %0 {offsets = [3, 0], sizes = [1, 128], strides = [1, 1]} : vector<8x128xf32> to vector<1x128xf32>
    %5 = vector.extract_strided_slice %0 {offsets = [4, 0], sizes = [1, 128], strides = [1, 1]} : vector<8x128xf32> to vector<1x128xf32>
    %6 = vector.extract_strided_slice %0 {offsets = [5, 0], sizes = [1, 128], strides = [1, 1]} : vector<8x128xf32> to vector<1x128xf32>
    %c0_1 = arith.constant 0 : index
    %c0_2 = arith.constant 0 : index
    %c0_3 = arith.constant 0 : index
    %7 = vector.load %arg1[%c0_1, %c0_2, %c0_3] : memref<2x16x128xf32, #tpu.memory_space<vmem>>, vector<2x16x128xf32>
    %8 = vector.shape_cast %7 : vector<2x16x128xf32> to vector<32x128xf32>
    %9 = arith.truncf %8 : vector<32x128xf32> to vector<32x128xbf16>
    %c0_4 = arith.constant 0 : index
    %c0_5 = arith.constant 0 : index
    %10 = vector.load %arg2[%c0_4, %c0_5] : memref<128x384xbf16, #tpu.memory_space<vmem>>, vector<128x384xbf16>
    %cst = arith.constant dense<0.000000e+00> : vector<32x384xf32>
    %11 = tpu.matmul %9, %10, %cst {dimension_numbers = #tpu.dot_dimension_numbers<[1], [0], [0], [1], [0, 0, 1, 1], [], []>} : vector<32x128xbf16>, vector<128x384xbf16>, vector<32x384xf32> -> vector<32x384xf32>
    %c0_6 = arith.constant 0 : index
    %c0_7 = arith.constant 0 : index
    %12 = vector.load %arg3[%c0_6, %c0_7] : memref<1x384xf32, #tpu.memory_space<vmem>>, vector<1x384xf32>
    %13 = vector.broadcast %12 : vector<1x384xf32> to vector<32x384xf32>
    %14 = arith.addf %11, %13 : vector<32x384xf32>
    %15 = arith.truncf %14 : vector<32x384xf32> to vector<32x384xbf16>
    %16 = vector.extract_strided_slice %15 {offsets = [0, 0], sizes = [32, 32], strides = [1, 1]} : vector<32x384xbf16> to vector<32x32xbf16>
    %17 = vector.shape_cast %16 : vector<32x32xbf16> to vector<2x16x32xbf16>
    %18 = vector.extract_strided_slice %15 {offsets = [0, 128], sizes = [32, 32], strides = [1, 1]} : vector<32x384xbf16> to vector<32x32xbf16>
    %19 = vector.shape_cast %18 : vector<32x32xbf16> to vector<2x16x32xbf16>
    %20 = vector.extract_strided_slice %15 {offsets = [0, 256], sizes = [32, 32], strides = [1, 1]} : vector<32x384xbf16> to vector<32x32xbf16>
    %21 = vector.shape_cast %20 : vector<32x32xbf16> to vector<2x16x32xbf16>
    "tpu.trace_start"() <{level = 10 : i32, message = "bqd,bkd->bqk"}> : () -> ()
    %cst_8 = arith.constant dense<0.000000e+00> : vector<2x16x16xf32>
    %22 = tpu.matmul %17, %19, %cst_8 {dimension_numbers = #tpu.dot_dimension_numbers<[2], [2], [1], [1], [0, 0, 0, 1, 1, 1], [0], [0]>} : vector<2x16x32xbf16>, vector<2x16x32xbf16>, vector<2x16x16xf32> -> vector<2x16x16xf32>
    "tpu.trace_stop"() : () -> ()
    %cst_9 = arith.constant dense<0xFF800000> : vector<2x16xf32>
    %23 = vector.multi_reduction <maximumf>, %22, %cst_9 [2] : vector<2x16x16xf32> to vector<2x16xf32>
    %24 = vector.shape_cast %23 : vector<2x16xf32> to vector<2x16x1xf32>
    %25 = vector.broadcast %24 : vector<2x16x1xf32> to vector<2x16x16xf32>
    %26 = arith.subf %22, %25 : vector<2x16x16xf32>
    %27 = math.exp %26 : vector<2x16x16xf32>
    %cst_10 = arith.constant dense<0.000000e+00> : vector<2x16xf32>
    %28 = vector.multi_reduction <add>, %27, %cst_10 [2] : vector<2x16x16xf32> to vector<2x16xf32>
    %29 = vector.shape_cast %28 : vector<2x16xf32> to vector<2x16x1xf32>
    %30 = vector.broadcast %29 : vector<2x16x1xf32> to vector<2x16x16xf32>
    %31 = arith.divf %27, %30 : vector<2x16x16xf32>
    %32 = arith.truncf %31 : vector<2x16x16xf32> to vector<2x16x16xbf16>
    "tpu.trace_start"() <{level = 10 : i32, message = "bqk,bkd->bqd"}> : () -> ()
    %cst_11 = arith.constant dense<0.000000e+00> : vector<2x16x32xf32>
    %33 = tpu.matmul %32, %21, %cst_11 {dimension_numbers = #tpu.dot_dimension_numbers<[2], [1], [1], [2], [0, 0, 0, 1, 1, 2], [0], [0]>} : vector<2x16x16xbf16>, vector<2x16x32xbf16>, vector<2x16x32xf32> -> vector<2x16x32xf32>
    "tpu.trace_stop"() : () -> ()
    %34 = vector.shape_cast %33 : vector<2x16x32xf32> to vector<32x32xf32>
    %35 = arith.truncf %34 : vector<32x32xf32> to vector<32x32xbf16>
    %c0_12 = arith.constant 0 : index
    %c0_13 = arith.constant 0 : index
    %36 = vector.load %arg10[%c0_12, %c0_13] : memref<32x128xbf16, #tpu.memory_space<vmem>>, vector<32x32xbf16>
    tpu.vector_store %arg10[%c0_12, %c0_13], %35 {strides = array<i32>} : memref<32x128xbf16, #tpu.memory_space<vmem>>, vector<32x32xbf16>,
    %37 = vector.extract_strided_slice %15 {offsets = [0, 32], sizes = [32, 32], strides = [1, 1]} : vector<32x384xbf16> to vector<32x32xbf16>
    %38 = vector.shape_cast %37 : vector<32x32xbf16> to vector<2x16x32xbf16>
    %39 = vector.extract_strided_slice %15 {offsets = [0, 160], sizes = [32, 32], strides = [1, 1]} : vector<32x384xbf16> to vector<32x32xbf16>
    %40 = vector.shape_cast %39 : vector<32x32xbf16> to vector<2x16x32xbf16>
    %41 = vector.extract_strided_slice %15 {offsets = [0, 288], sizes = [32, 32], strides = [1, 1]} : vector<32x384xbf16> to vector<32x32xbf16>
    %42 = vector.shape_cast %41 : vector<32x32xbf16> to vector<2x16x32xbf16>
    "tpu.trace_start"() <{level = 10 : i32, message = "bqd,bkd->bqk"}> : () -> ()
    %cst_14 = arith.constant dense<0.000000e+00> : vector<2x16x16xf32>
    %43 = tpu.matmul %38, %40, %cst_14 {dimension_numbers = #tpu.dot_dimension_numbers<[2], [2], [1], [1], [0, 0, 0, 1, 1, 1], [0], [0]>} : vector<2x16x32xbf16>, vector<2x16x32xbf16>, vector<2x16x16xf32> -> vector<2x16x16xf32>
    "tpu.trace_stop"() : () -> ()
    %cst_15 = arith.constant dense<0xFF800000> : vector<2x16xf32>
    %44 = vector.multi_reduction <maximumf>, %43, %cst_15 [2] : vector<2x16x16xf32> to vector<2x16xf32>
    %45 = vector.shape_cast %44 : vector<2x16xf32> to vector<2x16x1xf32>
    %46 = vector.broadcast %45 : vector<2x16x1xf32> to vector<2x16x16xf32>
    %47 = arith.subf %43, %46 : vector<2x16x16xf32>
    %48 = math.exp %47 : vector<2x16x16xf32>
    %cst_16 = arith.constant dense<0.000000e+00> : vector<2x16xf32>
    %49 = vector.multi_reduction <add>, %48, %cst_16 [2] : vector<2x16x16xf32> to vector<2x16xf32>
    %50 = vector.shape_cast %49 : vector<2x16xf32> to vector<2x16x1xf32>
    %51 = vector.broadcast %50 : vector<2x16x1xf32> to vector<2x16x16xf32>
    %52 = arith.divf %48, %51 : vector<2x16x16xf32>
    %53 = arith.truncf %52 : vector<2x16x16xf32> to vector<2x16x16xbf16>
    "tpu.trace_start"() <{level = 10 : i32, message = "bqk,bkd->bqd"}> : () -> ()
    %cst_17 = arith.constant dense<0.000000e+00> : vector<2x16x32xf32>
    %54 = tpu.matmul %53, %42, %cst_17 {dimension_numbers = #tpu.dot_dimension_numbers<[2], [1], [1], [2], [0, 0, 0, 1, 1, 2], [0], [0]>} : vector<2x16x16xbf16>, vector<2x16x32xbf16>, vector<2x16x32xf32> -> vector<2x16x32xf32>
    "tpu.trace_stop"() : () -> ()
    %55 = vector.shape_cast %54 : vector<2x16x32xf32> to vector<32x32xf32>
    %56 = arith.truncf %55 : vector<32x32xf32> to vector<32x32xbf16>
    %c0_18 = arith.constant 0 : index
    %c32 = arith.constant 32 : index
    %57 = vector.load %arg10[%c0_18, %c32] : memref<32x128xbf16, #tpu.memory_space<vmem>>, vector<32x32xbf16>
    tpu.vector_store %arg10[%c0_18, %c32], %56 {strides = array<i32>} : memref<32x128xbf16, #tpu.memory_space<vmem>>, vector<32x32xbf16>,
    %58 = vector.extract_strided_slice %15 {offsets = [0, 64], sizes = [32, 32], strides = [1, 1]} : vector<32x384xbf16> to vector<32x32xbf16>
    %59 = vector.shape_cast %58 : vector<32x32xbf16> to vector<2x16x32xbf16>
    %60 = vector.extract_strided_slice %15 {offsets = [0, 192], sizes = [32, 32], strides = [1, 1]} : vector<32x384xbf16> to vector<32x32xbf16>
    %61 = vector.shape_cast %60 : vector<32x32xbf16> to vector<2x16x32xbf16>
    %62 = vector.extract_strided_slice %15 {offsets = [0, 320], sizes = [32, 32], strides = [1, 1]} : vector<32x384xbf16> to vector<32x32xbf16>
    %63 = vector.shape_cast %62 : vector<32x32xbf16> to vector<2x16x32xbf16>
    "tpu.trace_start"() <{level = 10 : i32, message = "bqd,bkd->bqk"}> : () -> ()
    %cst_19 = arith.constant dense<0.000000e+00> : vector<2x16x16xf32>
    %64 = tpu.matmul %59, %61, %cst_19 {dimension_numbers = #tpu.dot_dimension_numbers<[2], [2], [1], [1], [0, 0, 0, 1, 1, 1], [0], [0]>} : vector<2x16x32xbf16>, vector<2x16x32xbf16>, vector<2x16x16xf32> -> vector<2x16x16xf32>
    "tpu.trace_stop"() : () -> ()
    %cst_20 = arith.constant dense<0xFF800000> : vector<2x16xf32>
    %65 = vector.multi_reduction <maximumf>, %64, %cst_20 [2] : vector<2x16x16xf32> to vector<2x16xf32>
    %66 = vector.shape_cast %65 : vector<2x16xf32> to vector<2x16x1xf32>
    %67 = vector.broadcast %66 : vector<2x16x1xf32> to vector<2x16x16xf32>
    %68 = arith.subf %64, %67 : vector<2x16x16xf32>
    %69 = math.exp %68 : vector<2x16x16xf32>
    %cst_21 = arith.constant dense<0.000000e+00> : vector<2x16xf32>
    %70 = vector.multi_reduction <add>, %69, %cst_21 [2] : vector<2x16x16xf32> to vector<2x16xf32>
    %71 = vector.shape_cast %70 : vector<2x16xf32> to vector<2x16x1xf32>
    %72 = vector.broadcast %71 : vector<2x16x1xf32> to vector<2x16x16xf32>
    %73 = arith.divf %69, %72 : vector<2x16x16xf32>
    %74 = arith.truncf %73 : vector<2x16x16xf32> to vector<2x16x16xbf16>
    "tpu.trace_start"() <{level = 10 : i32, message = "bqk,bkd->bqd"}> : () -> ()
    %cst_22 = arith.constant dense<0.000000e+00> : vector<2x16x32xf32>
    %75 = tpu.matmul %74, %63, %cst_22 {dimension_numbers = #tpu.dot_dimension_numbers<[2], [1], [1], [2], [0, 0, 0, 1, 1, 2], [0], [0]>} : vector<2x16x16xbf16>, vector<2x16x32xbf16>, vector<2x16x32xf32> -> vector<2x16x32xf32>
    "tpu.trace_stop"() : () -> ()
    %76 = vector.shape_cast %75 : vector<2x16x32xf32> to vector<32x32xf32>
    %77 = arith.truncf %76 : vector<32x32xf32> to vector<32x32xbf16>
    %c0_23 = arith.constant 0 : index
    %c64 = arith.constant 64 : index
    %78 = vector.load %arg10[%c0_23, %c64] : memref<32x128xbf16, #tpu.memory_space<vmem>>, vector<32x32xbf16>
    tpu.vector_store %arg10[%c0_23, %c64], %77 {strides = array<i32>} : memref<32x128xbf16, #tpu.memory_space<vmem>>, vector<32x32xbf16>,
    %79 = vector.extract_strided_slice %15 {offsets = [0, 96], sizes = [32, 32], strides = [1, 1]} : vector<32x384xbf16> to vector<32x32xbf16>
    %80 = vector.shape_cast %79 : vector<32x32xbf16> to vector<2x16x32xbf16>
    %81 = vector.extract_strided_slice %15 {offsets = [0, 224], sizes = [32, 32], strides = [1, 1]} : vector<32x384xbf16> to vector<32x32xbf16>
    %82 = vector.shape_cast %81 : vector<32x32xbf16> to vector<2x16x32xbf16>
    %83 = vector.extract_strided_slice %15 {offsets = [0, 352], sizes = [32, 32], strides = [1, 1]} : vector<32x384xbf16> to vector<32x32xbf16>
    %84 = vector.shape_cast %83 : vector<32x32xbf16> to vector<2x16x32xbf16>
    "tpu.trace_start"() <{level = 10 : i32, message = "bqd,bkd->bqk"}> : () -> ()
    %cst_24 = arith.constant dense<0.000000e+00> : vector<2x16x16xf32>
    %85 = tpu.matmul %80, %82, %cst_24 {dimension_numbers = #tpu.dot_dimension_numbers<[2], [2], [1], [1], [0, 0, 0, 1, 1, 1], [0], [0]>} : vector<2x16x32xbf16>, vector<2x16x32xbf16>, vector<2x16x16xf32> -> vector<2x16x16xf32>
    "tpu.trace_stop"() : () -> ()
    %cst_25 = arith.constant dense<0xFF800000> : vector<2x16xf32>
    %86 = vector.multi_reduction <maximumf>, %85, %cst_25 [2] : vector<2x16x16xf32> to vector<2x16xf32>
    %87 = vector.shape_cast %86 : vector<2x16xf32> to vector<2x16x1xf32>
    %88 = vector.broadcast %87 : vector<2x16x1xf32> to vector<2x16x16xf32>
    %89 = arith.subf %85, %88 : vector<2x16x16xf32>
    %90 = math.exp %89 : vector<2x16x16xf32>
    %cst_26 = arith.constant dense<0.000000e+00> : vector<2x16xf32>
    %91 = vector.multi_reduction <add>, %90, %cst_26 [2] : vector<2x16x16xf32> to vector<2x16xf32>
    %92 = vector.shape_cast %91 : vector<2x16xf32> to vector<2x16x1xf32>
    %93 = vector.broadcast %92 : vector<2x16x1xf32> to vector<2x16x16xf32>
    %94 = arith.divf %90, %93 : vector<2x16x16xf32>
    %95 = arith.truncf %94 : vector<2x16x16xf32> to vector<2x16x16xbf16>
    "tpu.trace_start"() <{level = 10 : i32, message = "bqk,bkd->bqd"}> : () -> ()
    %cst_27 = arith.constant dense<0.000000e+00> : vector<2x16x32xf32>
    %96 = tpu.matmul %95, %84, %cst_27 {dimension_numbers = #tpu.dot_dimension_numbers<[2], [1], [1], [2], [0, 0, 0, 1, 1, 2], [0], [0]>} : vector<2x16x16xbf16>, vector<2x16x32xbf16>, vector<2x16x32xf32> -> vector<2x16x32xf32>
    "tpu.trace_stop"() : () -> ()
    %97 = vector.shape_cast %96 : vector<2x16x32xf32> to vector<32x32xf32>
    %98 = arith.truncf %97 : vector<32x32xf32> to vector<32x32xbf16>
    %c0_28 = arith.constant 0 : index
    %c96 = arith.constant 96 : index
    %99 = vector.load %arg10[%c0_28, %c96] : memref<32x128xbf16, #tpu.memory_space<vmem>>, vector<32x32xbf16>
    tpu.vector_store %arg10[%c0_28, %c96], %98 {strides = array<i32>} : memref<32x128xbf16, #tpu.memory_space<vmem>>, vector<32x32xbf16>,
    %c0_29 = arith.constant 0 : index
    %c0_30 = arith.constant 0 : index
    %100 = vector.load %arg10[%c0_29, %c0_30] : memref<32x128xbf16, #tpu.memory_space<vmem>>, vector<32x128xbf16>
    %c0_31 = arith.constant 0 : index
    %c0_32 = arith.constant 0 : index
    %101 = vector.load %arg4[%c0_31, %c0_32] : memref<128x128xbf16, #tpu.memory_space<vmem>>, vector<128x128xbf16>
    %cst_33 = arith.constant dense<0.000000e+00> : vector<32x128xf32>
    %102 = tpu.matmul %100, %101, %cst_33 {dimension_numbers = #tpu.dot_dimension_numbers<[1], [0], [0], [1], [0, 0, 1, 1], [], []>} : vector<32x128xbf16>, vector<128x128xbf16>, vector<32x128xf32> -> vector<32x128xf32>
    %103 = vector.broadcast %1 : vector<1x128xf32> to vector<32x128xf32>
    %104 = arith.addf %102, %103 : vector<32x128xf32>
    %105 = arith.addf %104, %8 : vector<32x128xf32>
    %cst_34 = arith.constant dense<0.000000e+00> : vector<32xf32>
    %106 = vector.multi_reduction <add>, %105, %cst_34 [1] : vector<32x128xf32> to vector<32xf32>
    %107 = vector.shape_cast %106 : vector<32xf32> to vector<32x1xf32>
    %cst_35 = arith.constant 1.280000e+02 : f32
    %108 = vector.broadcast %cst_35 : f32 to vector<32x1xf32>
    %109 = arith.divf %107, %108 : vector<32x1xf32>
    %110 = vector.broadcast %109 : vector<32x1xf32> to vector<32x128xf32>
    %111 = arith.subf %105, %110 : vector<32x128xf32>
    %112 = vector.broadcast %109 : vector<32x1xf32> to vector<32x128xf32>
    %113 = arith.subf %105, %112 : vector<32x128xf32>
    %114 = arith.mulf %111, %113 : vector<32x128xf32>
    %cst_36 = arith.constant dense<0.000000e+00> : vector<32xf32>
    %115 = vector.multi_reduction <add>, %114, %cst_36 [1] : vector<32x128xf32> to vector<32xf32>
    %116 = vector.shape_cast %115 : vector<32xf32> to vector<32x1xf32>
    %cst_37 = arith.constant 1.280000e+02 : f32
    %117 = vector.broadcast %cst_37 : f32 to vector<32x1xf32>
    %118 = arith.divf %116, %117 : vector<32x1xf32>
    %119 = vector.broadcast %109 : vector<32x1xf32> to vector<32x128xf32>
    %120 = arith.subf %105, %119 : vector<32x128xf32>
    %cst_38 = arith.constant 9.99999974E-6 : f32
    %121 = vector.broadcast %cst_38 : f32 to vector<32x1xf32>
    %122 = arith.addf %118, %121 : vector<32x1xf32>
    %123 = math.rsqrt %122 : vector<32x1xf32>
    %124 = vector.broadcast %123 : vector<32x1xf32> to vector<32x128xf32>
    %125 = arith.mulf %120, %124 : vector<32x128xf32>
    %126 = vector.broadcast %3 : vector<1x128xf32> to vector<32x128xf32>
    %127 = arith.mulf %125, %126 : vector<32x128xf32>
    %128 = vector.broadcast %4 : vector<1x128xf32> to vector<32x128xf32>
    %129 = arith.addf %127, %128 : vector<32x128xf32>
    %130 = arith.truncf %129 : vector<32x128xf32> to vector<32x128xbf16>
    %c0_39 = arith.constant 0 : index
    %c0_40 = arith.constant 0 : index
    %131 = vector.load %arg5[%c0_39, %c0_40] : memref<128x512xbf16, #tpu.memory_space<vmem>>, vector<128x512xbf16>
    %cst_41 = arith.constant dense<0.000000e+00> : vector<32x512xf32>
    %132 = tpu.matmul %130, %131, %cst_41 {dimension_numbers = #tpu.dot_dimension_numbers<[1], [0], [0], [1], [0, 0, 1, 1], [], []>} : vector<32x128xbf16>, vector<128x512xbf16>, vector<32x512xf32> -> vector<32x512xf32>
    %c0_42 = arith.constant 0 : index
    %c0_43 = arith.constant 0 : index
    %133 = vector.load %arg6[%c0_42, %c0_43] : memref<1x512xf32, #tpu.memory_space<vmem>>, vector<1x512xf32>
    %134 = vector.broadcast %133 : vector<1x512xf32> to vector<32x512xf32>
    %135 = arith.addf %132, %134 : vector<32x512xf32>
    %cst_44 = arith.constant 0.000000e+00 : f32
    %136 = vector.broadcast %cst_44 : f32 to vector<32x512xf32>
    %137 = arith.maximumf %135, %136 : vector<32x512xf32>
    %138 = arith.truncf %137 : vector<32x512xf32> to vector<32x512xbf16>
    %c0_45 = arith.constant 0 : index
    %c0_46 = arith.constant 0 : index
    %139 = vector.load %arg7[%c0_45, %c0_46] : memref<512x128xbf16, #tpu.memory_space<vmem>>, vector<512x128xbf16>
    %cst_47 = arith.constant dense<0.000000e+00> : vector<32x128xf32>
    %140 = tpu.matmul %138, %139, %cst_47 {dimension_numbers = #tpu.dot_dimension_numbers<[1], [0], [0], [1], [0, 0, 1, 1], [], []>} : vector<32x512xbf16>, vector<512x128xbf16>, vector<32x128xf32> -> vector<32x128xf32>
    %141 = vector.broadcast %2 : vector<1x128xf32> to vector<32x128xf32>
    %142 = arith.addf %140, %141 : vector<32x128xf32>
    %143 = arith.addf %142, %129 : vector<32x128xf32>
    %cst_48 = arith.constant dense<0.000000e+00> : vector<32xf32>
    %144 = vector.multi_reduction <add>, %143, %cst_48 [1] : vector<32x128xf32> to vector<32xf32>
    %145 = vector.shape_cast %144 : vector<32xf32> to vector<32x1xf32>
    %cst_49 = arith.constant 1.280000e+02 : f32
    %146 = vector.broadcast %cst_49 : f32 to vector<32x1xf32>
    %147 = arith.divf %145, %146 : vector<32x1xf32>
    %148 = vector.broadcast %147 : vector<32x1xf32> to vector<32x128xf32>
    %149 = arith.subf %143, %148 : vector<32x128xf32>
    %150 = vector.broadcast %147 : vector<32x1xf32> to vector<32x128xf32>
    %151 = arith.subf %143, %150 : vector<32x128xf32>
    %152 = arith.mulf %149, %151 : vector<32x128xf32>
    %cst_50 = arith.constant dense<0.000000e+00> : vector<32xf32>
    %153 = vector.multi_reduction <add>, %152, %cst_50 [1] : vector<32x128xf32> to vector<32xf32>
    %154 = vector.shape_cast %153 : vector<32xf32> to vector<32x1xf32>
    %cst_51 = arith.constant 1.280000e+02 : f32
    %155 = vector.broadcast %cst_51 : f32 to vector<32x1xf32>
    %156 = arith.divf %154, %155 : vector<32x1xf32>
    %157 = vector.broadcast %147 : vector<32x1xf32> to vector<32x128xf32>
    %158 = arith.subf %143, %157 : vector<32x128xf32>
    %cst_52 = arith.constant 9.99999974E-6 : f32
    %159 = vector.broadcast %cst_52 : f32 to vector<32x1xf32>
    %160 = arith.addf %156, %159 : vector<32x1xf32>
    %161 = math.rsqrt %160 : vector<32x1xf32>
    %162 = vector.broadcast %161 : vector<32x1xf32> to vector<32x128xf32>
    %163 = arith.mulf %158, %162 : vector<32x128xf32>
    %164 = vector.broadcast %5 : vector<1x128xf32> to vector<32x128xf32>
    %165 = arith.mulf %163, %164 : vector<32x128xf32>
    %166 = vector.broadcast %6 : vector<1x128xf32> to vector<32x128xf32>
    %167 = arith.addf %165, %166 : vector<32x128xf32>
    %168 = vector.shape_cast %167 : vector<32x128xf32> to vector<2x16x128xf32>
    %c0_53 = arith.constant 0 : index
    %c0_54 = arith.constant 0 : index
    %c0_55 = arith.constant 0 : index
    %169 = vector.load %arg9[%c0_53, %c0_54, %c0_55] : memref<2x16x128xf32, #tpu.memory_space<vmem>>, vector<2x16x128xf32>
    tpu.vector_store %arg9[%c0_53, %c0_54, %c0_55], %168 {strides = array<i32>} : memref<2x16x128xf32, #tpu.memory_space<vmem>>, vector<2x16x128xf32>,
    return
  }
  func.func @transform_0(%arg0: i32) -> (i32, i32, i32) {
    %c0_i32 = arith.constant 0 : i32
    %c0_i32_0 = arith.constant 0 : i32
    %c0_i32_1 = arith.constant 0 : i32
    return %arg0, %c0_i32, %c0_i32_0 : i32, i32, i32
  }
  func.func @transform_1(%arg0: i32) -> (i32, i32) {
    %c0_i32 = arith.constant 0 : i32
    %c0_i32_0 = arith.constant 0 : i32
    %c0_i32_1 = arith.constant 0 : i32
    return %c0_i32, %c0_i32_0 : i32, i32
  }
  func.func @transform_2(%arg0: i32) -> (i32, i32) {
    %c0_i32 = arith.constant 0 : i32
    %c0_i32_0 = arith.constant 0 : i32
    %c0_i32_1 = arith.constant 0 : i32
    return %c0_i32, %c0_i32_0 : i32, i32
  }
  func.func @transform_3(%arg0: i32) -> (i32, i32) {
    %c0_i32 = arith.constant 0 : i32
    %c0_i32_0 = arith.constant 0 : i32
    %c0_i32_1 = arith.constant 0 : i32
    return %c0_i32, %c0_i32_0 : i32, i32
  }
  func.func @transform_4(%arg0: i32) -> (i32, i32) {
    %c0_i32 = arith.constant 0 : i32
    %c0_i32_0 = arith.constant 0 : i32
    %c0_i32_1 = arith.constant 0 : i32
    return %c0_i32, %c0_i32_0 : i32, i32
  }
  func.func @transform_5(%arg0: i32) -> (i32, i32) {
    %c0_i32 = arith.constant 0 : i32
    %c0_i32_0 = arith.constant 0 : i32
    %c0_i32_1 = arith.constant 0 : i32
    return %c0_i32, %c0_i32_0 : i32, i32
  }
  func.func @transform_6(%arg0: i32) -> (i32, i32) {
    %c0_i32 = arith.constant 0 : i32
    %c0_i32_0 = arith.constant 0 : i32
    %c0_i32_1 = arith.constant 0 : i32
    return %c0_i32, %c0_i32_0 : i32, i32
  }
  func.func @transform_7(%arg0: i32) -> (i32, i32) {
    %c0_i32 = arith.constant 0 : i32
    %c0_i32_0 = arith.constant 0 : i32
    %c0_i32_1 = arith.constant 0 : i32
    return %c0_i32, %c0_i32_0 : i32, i32
  }
  func.func @transform_8(%arg0: i32) -> (i32, i32, i32) {
    %c0_i32 = arith.constant 0 : i32
    %c0_i32_0 = arith.constant 0 : i32
    %c0_i32_1 = arith.constant 0 : i32
    return %arg0, %c0_i32, %c0_i32_0 : i32, i32, i32
  }
}

</mosaic_0001>

<llo_original>
// kernel: tpu_custom_call.1
$region0: #{tpu_custom_call.1}
  #allocation0 [shape = 'u32[]', space=smem, size = 0x4, offset = 0x4, fixed_abs, tag = 'smem constant byte address 0x4 - core index']
  #allocation1 [shape = 'u32[144,128]{1,0:T(1,128)}', space=vmem, size = 0x12000, scoped, tag = 'internal scratch']
  #allocation2 [shape = 'bf16[32,128]{1,0:T(8,128)(2,1)}', space=vmem, size = 0x2000, scoped, tag = 'scratch operand']
  %s0 = inlined_call_operand.hbm [shape: f32[4,16,128], index: 0, kind: input, shape index: {}]
  %s1 = inlined_call_operand.hbm [shape: bf16[128,384], index: 1, kind: input, shape index: {}]
  %s2 = inlined_call_operand.hbm [shape: f32[1,384], index: 2, kind: input, shape index: {}]
  %s3 = inlined_call_operand.hbm [shape: bf16[128,128], index: 3, kind: input, shape index: {}]
  %s4 = inlined_call_operand.hbm [shape: bf16[128,512], index: 4, kind: input, shape index: {}]
  %s5 = inlined_call_operand.vmem [shape: f32[1,512], index: 5, kind: input, shape index: {}]
  %s6 = inlined_call_operand.hbm [shape: bf16[512,128], index: 6, kind: input, shape index: {}]
  %s7 = inlined_call_operand.vmem [shape: f32[8,128], index: 7, kind: input, shape index: {}]
  %s8 = inlined_call_operand.hbm [shape: f32[4,16,128], index: 8, kind: output, shape index: {}]
  %s9 = sld [smem:[#allocation0]]
  $region89: #{tpu_custom_call.1} parent=0
    _
  %s11 = ssub.s32 1, %s9
  %s12 = scalar_select 0, %s11, %s9
  $region1: #{tpu_custom_call.1} parent=0
    #allocation3 [shape = 'u8[32768]{0}', space=vmem, size = 0x8000, scoped, tag = 'input window, operand 0']
    #allocation4 [shape = 's32[2]{0}', space=sflag, size = 0x8, scoped, tag = 'scoped memory for tpu_custom_call.1']
    #allocation5 [shape = 's32[2]{0}', space=sflag, size = 0x8, scoped, tag = 'scoped memory for tpu_custom_call.1']
    #allocation6 [shape = 'u8[98304]{0}', space=vmem, size = 0x18000, scoped, tag = 'input window, operand 1, single buffered']
    #allocation7 [shape = 's32[1]{0}', space=sflag, size = 0x4, scoped, tag = 'scoped memory for tpu_custom_call.1']
    #allocation8 [shape = 'u8[1536]{0}', space=vmem, size = 0x800, scoped, tag = 'input window, operand 2, single buffered']
    #allocation9 [shape = 'u8[32768]{0}', space=vmem, size = 0x8000, scoped, tag = 'input window, operand 3, single buffered']
    #allocation10 [shape = 's32[1]{0}', space=sflag, size = 0x4, scoped, tag = 'scoped memory for tpu_custom_call.1']
    #allocation11 [shape = 'u8[131072]{0}', space=vmem, size = 0x20000, scoped, tag = 'input window, operand 4, single buffered']
    #allocation12 [shape = 'u8[131072]{0}', space=vmem, size = 0x20000, scoped, tag = 'input window, operand 6, single buffered']
    #allocation13 [shape = 's32[1]{0}', space=sflag, size = 0x4, scoped, tag = 'scoped memory for tpu_custom_call.1']
    #allocation14 [shape = 'u8[32768]{0}', space=vmem, size = 0x8000, scoped, tag = 'output window, operand 0']
    %13 = vsyncpa [#allocation4], 0
    %s14 = scalar_lea.sflag [#allocation4], 1
    %15 = vsyncpa %s14, 0
    %16 = vsyncpa [#allocation7], 0
    %17 = vsyncpa [#allocation10], 0
    %18 = vsyncpa [#allocation13], 0
    %19 = vsyncpa [#allocation5], 0
    %s20 = scalar_lea.sflag [#allocation5], 1
    %21 = vsyncpa %s20, 0
    loop: start=0, step=1, limit=4
    $region2: #{tpu_custom_call.1} parent=1 // loop_pre_header
      _
    $region3: #{tpu_custom_call.1} parent=1 // loop_header
      %s23 = sphi 0, %s27
      %p24 = scmp.ge.s32.totalorder %s23, 4
      %s33 = sphi 0, %s35
      %s36 = sphi 0, %s33
      %s37 = sphi 0, %s36
      %s53 = sphi 0, %s37
      %s57 = sphi 0, %s57
      %s59 = sphi 0, %s57
      %s60 = sphi 0, %s59
      %s74 = sphi 0, %s60
      %s78 = sphi 0, %s78
      %s80 = sphi 0, %s78
      %s81 = sphi 0, %s80
      %s95 = sphi 0, %s81
      %s99 = sphi 0, %s99
      %s101 = sphi 0, %s99
      %s102 = sphi 0, %s101
      %s116 = sphi 0, %s102
      %s120 = sphi 0, %s120
      %s122 = sphi 0, %s120
      %s123 = sphi 0, %s122
      %s137 = sphi 0, %s123
      %s141 = sphi 0, %s141
      %s143 = sphi 0, %s141
      %s144 = sphi 0, %s143
      %s158 = sphi 0, %s144
      %s162 = sphi 0, %s162
      %s164 = sphi 0, %s162
      %s165 = sphi 0, %s164
      %s179 = sphi 0, %s165
      %s183 = sphi 0, %s183
      %s185 = sphi 0, %s183
      %s186 = sphi 0, %s185
      %s200 = sphi 0, %s186
      %s206 = sphi 0, %s208
      %s209 = sphi 0, %s206
      %s210 = sphi 0, %s209
      %s226 = sphi 0, %s210
    $region4: #{tpu_custom_call.1} parent=1 // loop_header_branch
      %26 = sbr.rel (%p24) target = $region8
    $region5: #{tpu_custom_call.1} parent=1 // loop_body
      %s28 = ssub.s32 %s23, 1
      %s29 = ssub.s32 %s23, 2
      %s30 = sadd.s32 %s23, 1
      %s31 = ssub.s32 %s23, %s30
      %p32 = scmp.eq.s32.totalorder %s31, 0
      %s34 = sadd.s32 %s33, 1
      %s35 = scalar_select %p32, %s33, %s34
      %p38 = pneg %p32
      %p39 = scmp.eq.s32.totalorder %s23, 1
      %p40 = por %p38, %p39
      %p41 = scmp.ne.s32.totalorder %s33, %s36
      %p42 = scmp.eq.s32.totalorder %s23, 0
      %p43 = por %p41, %p42
      %p44 = scmp.ne.s32.totalorder %s33, %s36
      %p45 = scmp.eq.s32.totalorder %s28, 1
      %p46 = por %p44, %p45
      %p47 = scmp.ne.s32.totalorder %s36, %s37
      %p48 = scmp.eq.s32.totalorder %s28, 0
      %p49 = por %p47, %p48
      %p50 = scmp.ne.s32.totalorder %s36, %s37
      %p51 = scmp.eq.s32.totalorder %s29, 1
      %p52 = por %p50, %p51
      %p54 = scmp.ne.s32.totalorder %s37, %s53
      %p55 = scmp.eq.s32.totalorder %s29, 0
      %p56 = por %p54, %p55
      %s58 = sadd.s32 %s57, 1
      %p61 = scmp.eq.s32.totalorder %s23, 1
      %p62 = scmp.ne.s32.totalorder %s57, %s59
      %p63 = scmp.eq.s32.totalorder %s23, 0
      %p64 = por %p62, %p63
      %p65 = scmp.ne.s32.totalorder %s57, %s59
      %p66 = scmp.eq.s32.totalorder %s28, 1
      %p67 = por %p65, %p66
      %p68 = scmp.ne.s32.totalorder %s59, %s60
      %p69 = scmp.eq.s32.totalorder %s28, 0
      %p70 = por %p68, %p69
      %p71 = scmp.ne.s32.totalorder %s59, %s60
      %p72 = scmp.eq.s32.totalorder %s29, 1
      %p73 = por %p71, %p72
      %p75 = scmp.ne.s32.totalorder %s60, %s74
      %p76 = scmp.eq.s32.totalorder %s29, 0
      %p77 = por %p75, %p76
      %s79 = sadd.s32 %s78, 1
      %p82 = scmp.eq.s32.totalorder %s23, 1
      %p83 = scmp.ne.s32.totalorder %s78, %s80
      %p84 = scmp.eq.s32.totalorder %s23, 0
      %p85 = por %p83, %p84
      %p86 = scmp.ne.s32.totalorder %s78, %s80
      %p87 = scmp.eq.s32.totalorder %s28, 1
      %p88 = por %p86, %p87
      %p89 = scmp.ne.s32.totalorder %s80, %s81
      %p90 = scmp.eq.s32.totalorder %s28, 0
      %p91 = por %p89, %p90
      %p92 = scmp.ne.s32.totalorder %s80, %s81
      %p93 = scmp.eq.s32.totalorder %s29, 1
      %p94 = por %p92, %p93
      %p96 = scmp.ne.s32.totalorder %s81, %s95
      %p97 = scmp.eq.s32.totalorder %s29, 0
      %p98 = por %p96, %p97
      %s100 = sadd.s32 %s99, 1
      %p103 = scmp.eq.s32.totalorder %s23, 1
      %p104 = scmp.ne.s32.totalorder %s99, %s101
      %p105 = scmp.eq.s32.totalorder %s23, 0
      %p106 = por %p104, %p105
      %p107 = scmp.ne.s32.totalorder %s99, %s101
      %p108 = scmp.eq.s32.totalorder %s28, 1
      %p109 = por %p107, %p108
      %p110 = scmp.ne.s32.totalorder %s101, %s102
      %p111 = scmp.eq.s32.totalorder %s28, 0
      %p112 = por %p110, %p111
      %p113 = scmp.ne.s32.totalorder %s101, %s102
      %p114 = scmp.eq.s32.totalorder %s29, 1
      %p115 = por %p113, %p114
      %p117 = scmp.ne.s32.totalorder %s102, %s116
      %p118 = scmp.eq.s32.totalorder %s29, 0
      %p119 = por %p117, %p118
      %s121 = sadd.s32 %s120, 1
      %p124 = scmp.eq.s32.totalorder %s23, 1
      %p125 = scmp.ne.s32.totalorder %s120, %s122
      %p126 = scmp.eq.s32.totalorder %s23, 0
      %p127 = por %p125, %p126
      %p128 = scmp.ne.s32.totalorder %s120, %s122
      %p129 = scmp.eq.s32.totalorder %s28, 1
      %p130 = por %p128, %p129
      %p131 = scmp.ne.s32.totalorder %s122, %s123
      %p132 = scmp.eq.s32.totalorder %s28, 0
      %p133 = por %p131, %p132
      %p134 = scmp.ne.s32.totalorder %s122, %s123
      %p135 = scmp.eq.s32.totalorder %s29, 1
      %p136 = por %p134, %p135
      %p138 = scmp.ne.s32.totalorder %s123, %s137
      %p139 = scmp.eq.s32.totalorder %s29, 0
      %p140 = por %p138, %p139
      %s142 = sadd.s32 %s141, 1
      %p145 = scmp.eq.s32.totalorder %s23, 1
      %p146 = scmp.ne.s32.totalorder %s141, %s143
      %p147 = scmp.eq.s32.totalorder %s23, 0
      %p148 = por %p146, %p147
      %p149 = scmp.ne.s32.totalorder %s141, %s143
      %p150 = scmp.eq.s32.totalorder %s28, 1
      %p151 = por %p149, %p150
      %p152 = scmp.ne.s32.totalorder %s143, %s144
      %p153 = scmp.eq.s32.totalorder %s28, 0
      %p154 = por %p152, %p153
      %p155 = scmp.ne.s32.totalorder %s143, %s144
      %p156 = scmp.eq.s32.totalorder %s29, 1
      %p157 = por %p155, %p156
      %p159 = scmp.ne.s32.totalorder %s144, %s158
      %p160 = scmp.eq.s32.totalorder %s29, 0
      %p161 = por %p159, %p160
      %s163 = sadd.s32 %s162, 1
      %p166 = scmp.eq.s32.totalorder %s23, 1
      %p167 = scmp.ne.s32.totalorder %s162, %s164
      %p168 = scmp.eq.s32.totalorder %s23, 0
      %p169 = por %p167, %p168
      %p170 = scmp.ne.s32.totalorder %s162, %s164
      %p171 = scmp.eq.s32.totalorder %s28, 1
      %p172 = por %p170, %p171
      %p173 = scmp.ne.s32.totalorder %s164, %s165
      %p174 = scmp.eq.s32.totalorder %s28, 0
      %p175 = por %p173, %p174
      %p176 = scmp.ne.s32.totalorder %s164, %s165
      %p177 = scmp.eq.s32.totalorder %s29, 1
      %p178 = por %p176, %p177
      %p180 = scmp.ne.s32.totalorder %s165, %s179
      %p181 = scmp.eq.s32.totalorder %s29, 0
      %p182 = por %p180, %p181
      %s184 = sadd.s32 %s183, 1
      %p187 = scmp.eq.s32.totalorder %s23, 1
      %p188 = scmp.ne.s32.totalorder %s183, %s185
      %p189 = scmp.eq.s32.totalorder %s23, 0
      %p190 = por %p188, %p189
      %p191 = scmp.ne.s32.totalorder %s183, %s185
      %p192 = scmp.eq.s32.totalorder %s28, 1
      %p193 = por %p191, %p192
      %p194 = scmp.ne.s32.totalorder %s185, %s186
      %p195 = scmp.eq.s32.totalorder %s28, 0
      %p196 = por %p194, %p195
      %p197 = scmp.ne.s32.totalorder %s185, %s186
      %p198 = scmp.eq.s32.totalorder %s29, 1
      %p199 = por %p197, %p198
      %p201 = scmp.ne.s32.totalorder %s186, %s200
      %p202 = scmp.eq.s32.totalorder %s29, 0
      %p203 = por %p201, %p202
      %s204 = ssub.s32 %s23, %s30
      %p205 = scmp.eq.s32.totalorder %s204, 0
      %s207 = sadd.s32 %s206, 1
      %s208 = scalar_select %p205, %s206, %s207
      %p211 = pneg %p205
      %p212 = scmp.eq.s32.totalorder %s23, 1
      %p213 = por %p211, %p212
      %p214 = scmp.ne.s32.totalorder %s206, %s209
      %p215 = scmp.eq.s32.totalorder %s23, 0
      %p216 = por %p214, %p215
      %p217 = scmp.ne.s32.totalorder %s206, %s209
      %p218 = scmp.eq.s32.totalorder %s28, 1
      %p219 = por %p217, %p218
      %p220 = scmp.ne.s32.totalorder %s209, %s210
      %p221 = scmp.eq.s32.totalorder %s28, 0
      %p222 = por %p220, %p221
      %p223 = scmp.ne.s32.totalorder %s209, %s210
      %p224 = scmp.eq.s32.totalorder %s29, 1
      %p225 = por %p223, %p224
      %p227 = scmp.ne.s32.totalorder %s210, %s226
      %p228 = scmp.eq.s32.totalorder %s29, 0
      %p229 = por %p227, %p228
      %p230 = scmp.le.s32.totalorder 1, %s23
      %p231 = scmp.lt.s32.totalorder %s23, 3
      %p232 = pnand %p230, %p231
      %p233 = pneg %p232
      // Predicated region
      $region9: #{tpu_custom_call.1} parent=5 // pred_check
        _
      $region10: #{tpu_custom_call.1} parent=5 // pred_check_branch
        %235 = sbr.rel (%p232) target = $region12
      $region11: #{tpu_custom_call.1} parent=5 // pred_region
        %s236 = ssub.s32 %s23, 1
        // Predicated region
        $region13: #{tpu_custom_call.1} parent=11 // pred_check
          %p237 = pneg %p70
        $region14: #{tpu_custom_call.1} parent=11 // pred_check_branch
          %239 = sbr.rel (%p237) target = $region16
        $region15: #{tpu_custom_call.1} parent=11 // pred_region
          %s241 = ssub.s32 3072, 3072
          %242 = vsyncadd [#allocation7], %s241
          %s243 = sshll.u32 [#allocation6], 4
          %s244 = int_to_ptr.vmem [resolvable:$true] %s243
          %249 = dma.hbm_to_vmem [thread:$0]  %s1, 3072, %s244, [#allocation7], 192, 192, 12
        $region16: #{tpu_custom_call.1} parent=11 // pred_fallthru
          _
        // Predicated region
        $region17: #{tpu_custom_call.1} parent=11 // pred_check
          %p250 = pneg %p91
        $region18: #{tpu_custom_call.1} parent=11 // pred_check_branch
          %252 = sbr.rel (%p250) target = $region20
        $region19: #{tpu_custom_call.1} parent=11 // pred_region
          %s254 = ssub.s32 48, 48
          %255 = vsyncadd [#allocation7], %s254
          %s257 = sshll.u32 [#allocation8], 4
          %s258 = int_to_ptr.vmem [resolvable:$true] %s257
          %260 = dma.hbm_to_vmem [thread:$0]  %s2, 48, %s258, [#allocation7]
        $region20: #{tpu_custom_call.1} parent=11 // pred_fallthru
          _
        // Predicated region
        $region21: #{tpu_custom_call.1} parent=11 // pred_check
          %p261 = pneg %p112
        $region22: #{tpu_custom_call.1} parent=11 // pred_check_branch
          %263 = sbr.rel (%p261) target = $region24
        $region23: #{tpu_custom_call.1} parent=11 // pred_region
          %s265 = ssub.s32 1024, 1024
          %266 = vsyncadd [#allocation10], %s265
          %s267 = sshll.u32 [#allocation9], 4
          %s268 = int_to_ptr.vmem [resolvable:$true] %s267
          %273 = dma.hbm_to_vmem [thread:$0]  %s3, 1024, %s268, [#allocation10], 64, 64, 4
        $region24: #{tpu_custom_call.1} parent=11 // pred_fallthru
          _
        // Predicated region
        $region25: #{tpu_custom_call.1} parent=11 // pred_check
          %p274 = pneg %p133
        $region26: #{tpu_custom_call.1} parent=11 // pred_check_branch
          %276 = sbr.rel (%p274) target = $region28
        $region27: #{tpu_custom_call.1} parent=11 // pred_region
          %s278 = ssub.s32 4096, 4096
          %279 = vsyncadd [#allocation10], %s278
          %s280 = sshll.u32 [#allocation11], 4
          %s281 = int_to_ptr.vmem [resolvable:$true] %s280
          %286 = dma.hbm_to_vmem [thread:$0]  %s4, 4096, %s281, [#allocation10], 256, 256, 16
        $region28: #{tpu_custom_call.1} parent=11 // pred_fallthru
          _
        // Predicated region
        $region29: #{tpu_custom_call.1} parent=11 // pred_check
          %p287 = pneg %p154
        $region30: #{tpu_custom_call.1} parent=11 // pred_check_branch
          %289 = sbr.rel (%p287) target = $region32
        $region31: #{tpu_custom_call.1} parent=11 // pred_region
          _
        $region32: #{tpu_custom_call.1} parent=11 // pred_fallthru
          _
        // Predicated region
        $region33: #{tpu_custom_call.1} parent=11 // pred_check
          %p290 = pneg %p175
        $region34: #{tpu_custom_call.1} parent=11 // pred_check_branch
          %292 = sbr.rel (%p290) target = $region36
        $region35: #{tpu_custom_call.1} parent=11 // pred_region
          %s294 = ssub.s32 4096, 4096
          %295 = vsyncadd [#allocation13], %s294
          %s296 = sshll.u32 [#allocation12], 4
          %s297 = int_to_ptr.vmem [resolvable:$true] %s296
          %302 = dma.hbm_to_vmem [thread:$0]  %s6, 4096, %s297, [#allocation13], 64, 64, 4
        $region36: #{tpu_custom_call.1} parent=11 // pred_fallthru
          _
        // Predicated region
        $region37: #{tpu_custom_call.1} parent=11 // pred_check
          %p303 = pneg %p196
        $region38: #{tpu_custom_call.1} parent=11 // pred_check_branch
          %305 = sbr.rel (%p303) target = $region40
        $region39: #{tpu_custom_call.1} parent=11 // pred_region
          _
        $region40: #{tpu_custom_call.1} parent=11 // pred_fallthru
          _
      $region12: #{tpu_custom_call.1} parent=5 // pred_fallthru
        _
      %p306 = scmp.lt.s32.totalorder %s23, 2
      // Predicated region
      $region41: #{tpu_custom_call.1} parent=5 // pred_check
        %p307 = pneg %p306
      $region42: #{tpu_custom_call.1} parent=5 // pred_check_branch
        %309 = sbr.rel (%p307) target = $region44
      $region43: #{tpu_custom_call.1} parent=5 // pred_region
        // Predicated region
        $region45: #{tpu_custom_call.1} parent=43 // pred_check
          %p310 = pneg %p43
        $region46: #{tpu_custom_call.1} parent=43 // pred_check_branch
          %312 = sbr.rel (%p310) target = $region48
        $region47: #{tpu_custom_call.1} parent=43 // pred_region
          %s313 = sand.u32 %s33, 1
          %s314 = scalar_lea.sflag [#allocation4], %s313
          %s315 = sand.u32 %s33, 1
          %s316 = smul.addr %s315, 32
          %s317 = scalar_lea.vmem [#allocation3], %s316
          %s318 = smul.u32 2, %s23
          %s320 = ssub.s32 512, 512
          %321 = vsyncadd %s314, %s320
          %s322 = smul.addr %s318, 2
          %s323 = smul.addr %s322, 128
          %s324 = scalar_lea.hbm %s0, %s323
          %s325 = sshll.u32 %s317, 4
          %s326 = int_to_ptr.vmem [resolvable:$true] %s325
          %331 = dma.hbm_to_vmem [thread:$0]  %s324, 512, %s326, %s314, 128, 128, 8
        $region48: #{tpu_custom_call.1} parent=43 // pred_fallthru
          _
      $region44: #{tpu_custom_call.1} parent=5 // pred_fallthru
        _
      %p332 = scmp.le.s32.totalorder 1, %s23
      %p333 = scmp.lt.s32.totalorder %s23, 3
      %p334 = pnand %p332, %p333
      %p335 = pneg %p334
      // Predicated region
      $region49: #{tpu_custom_call.1} parent=5 // pred_check
        _
      $region50: #{tpu_custom_call.1} parent=5 // pred_check_branch
        %337 = sbr.rel (%p334) target = $region52
      $region51: #{tpu_custom_call.1} parent=5 // pred_region
        %s338 = ssub.s32 %s23, 1
        %s339 = sand.u32 %s36, 1
        %s340 = scalar_lea.sflag [#allocation4], %s339
        %s341 = sand.u32 %s36, 1
        %s342 = smul.addr %s341, 32
        %s343 = scalar_lea.vmem [#allocation3], %s342
        // Predicated region
        $region53: #{tpu_custom_call.1} parent=51 // pred_check
          %p344 = pneg %p49
        $region54: #{tpu_custom_call.1} parent=51 // pred_check_branch
          %346 = sbr.rel (%p344) target = $region56
        $region55: #{tpu_custom_call.1} parent=51 // pred_region
          %347 = dma.done %s340, 512
        $region56: #{tpu_custom_call.1} parent=51 // pred_fallthru
          _
        // Predicated region
        $region57: #{tpu_custom_call.1} parent=51 // pred_check
          %p348 = pneg %p70
        $region58: #{tpu_custom_call.1} parent=51 // pred_check_branch
          %350 = sbr.rel (%p348) target = $region60
        $region59: #{tpu_custom_call.1} parent=51 // pred_region
          %351 = dma.done [#allocation7], 3072
        $region60: #{tpu_custom_call.1} parent=51 // pred_fallthru
          _
        // Predicated region
        $region61: #{tpu_custom_call.1} parent=51 // pred_check
          %p352 = pneg %p91
        $region62: #{tpu_custom_call.1} parent=51 // pred_check_branch
          %354 = sbr.rel (%p352) target = $region64
        $region63: #{tpu_custom_call.1} parent=51 // pred_region
          %355 = dma.done [#allocation7], 48
        $region64: #{tpu_custom_call.1} parent=51 // pred_fallthru
          _
        // Predicated region
        $region65: #{tpu_custom_call.1} parent=51 // pred_check
          %p356 = pneg %p112
        $region66: #{tpu_custom_call.1} parent=51 // pred_check_branch
          %358 = sbr.rel (%p356) target = $region68
        $region67: #{tpu_custom_call.1} parent=51 // pred_region
          %359 = dma.done [#allocation10], 1024
        $region68: #{tpu_custom_call.1} parent=51 // pred_fallthru
          _
        // Predicated region
        $region69: #{tpu_custom_call.1} parent=51 // pred_check
          %p360 = pneg %p133
        $region70: #{tpu_custom_call.1} parent=51 // pred_check_branch
          %362 = sbr.rel (%p360) target = $region72
        $region71: #{tpu_custom_call.1} parent=51 // pred_region
          %363 = dma.done [#allocation10], 4096
        $region72: #{tpu_custom_call.1} parent=51 // pred_fallthru
          _
        // Predicated region
        $region73: #{tpu_custom_call.1} parent=51 // pred_check
          %p364 = pneg %p175
        $region74: #{tpu_custom_call.1} parent=51 // pred_check_branch
          %366 = sbr.rel (%p364) target = $region76
        $region75: #{tpu_custom_call.1} parent=51 // pred_region
          %367 = dma.done [#allocation13], 4096
        $region76: #{tpu_custom_call.1} parent=51 // pred_fallthru
          _
        %s368 = sand.u32 %s36, 1
        %s369 = scalar_lea.sflag [#allocation4], %s368
        %s370 = sand.u32 %s36, 1
        %s371 = smul.addr %s370, 32
        %s372 = scalar_lea.vmem [#allocation3], %s371
        %p373 = pneg %p49
        %p374 = pneg %p46
        %p375 = pneg %p70
        %p376 = pneg %p67
        %p377 = pneg %p91
        %p378 = pneg %p88
        %p379 = pneg %p112
        %p380 = pneg %p109
        %p381 = pneg %p133
        %p382 = pneg %p130
        %p383 = pneg %p154
        %p384 = pneg %p151
        %p385 = pneg %p175
        %p386 = pneg %p172
        %p387 = pneg %p196
        %p388 = pneg %p193
        %p389 = pneg %p222
        %p390 = pneg %p219
        %s391 = sand.u32 %s209, 1
        %s392 = scalar_lea.sflag [#allocation5], %s391
        %s393 = sand.u32 %s209, 1
        %s394 = smul.addr %s393, 32
        %s395 = scalar_lea.vmem [#allocation14], %s394
        %s396 = smul.u32 2, %s28
        %s397 = smul.u32 2, %s28
        %v399 = vld [vmem:[%s7] sm:$0xff]
        %v400 = vld [vmem:[%s343] sm:$0xff]
        %v401 = vld [vmem:[%s343 + $0x8] sm:$0xff]
        %v402 = vld [vmem:[%s343 + $0x10] sm:$0xff]
        %v403 = vld [vmem:[%s343 + $0x18] sm:$0xff]
        %v404 = vpack.c.bf16 %v401, %v400
        %v405 = vpack.c.bf16 %v403, %v402
        %v406 = vld [vmem:[#allocation6] sm:$0xff]
        %v407 = vld [vmem:[#allocation6 + $0x8] sm:$0xf]
        %v408 = vld [vmem:[#allocation6 + $0xc] sm:$0xff]
        %v409 = vld [vmem:[#allocation6 + $0x14] sm:$0xf]
        %v410 = vld [vmem:[#allocation6 + $0x18] sm:$0xff]
        %v411 = vld [vmem:[#allocation6 + $0x20] sm:$0xf]
        %v412 = vld [vmem:[#allocation6 + $0x24] sm:$0xff]
        %v413 = vld [vmem:[#allocation6 + $0x2c] sm:$0xf]
        %v414 = vld [vmem:[#allocation6 + $0x30] sm:$0xff]
        %v415 = vld [vmem:[#allocation6 + $0x38] sm:$0xf]
        %v416 = vld [vmem:[#allocation6 + $0x3c] sm:$0xff]
        %v417 = vld [vmem:[#allocation6 + $0x44] sm:$0xf]
        %v418 = vld [vmem:[#allocation6 + $0x48] sm:$0xff]
        %v419 = vld [vmem:[#allocation6 + $0x50] sm:$0xf]
        %v420 = vld [vmem:[#allocation6 + $0x54] sm:$0xff]
        %v421 = vld [vmem:[#allocation6 + $0x5c] sm:$0xf]
        %v422 = vld [vmem:[#allocation6 + $0x60] sm:$0xff]
        %v423 = vld [vmem:[#allocation6 + $0x68] sm:$0xf]
        %v424 = vld [vmem:[#allocation6 + $0x6c] sm:$0xff]
        %v425 = vld [vmem:[#allocation6 + $0x74] sm:$0xf]
        %v426 = vld [vmem:[#allocation6 + $0x78] sm:$0xff]
        %v427 = vld [vmem:[#allocation6 + $0x80] sm:$0xf]
        %v428 = vld [vmem:[#allocation6 + $0x84] sm:$0xff]
        %v429 = vld [vmem:[#allocation6 + $0x8c] sm:$0xf]
        %v430 = vld [vmem:[#allocation6 + $0x90] sm:$0xff]
        %v431 = vld [vmem:[#allocation6 + $0x98] sm:$0xf]
        %v432 = vld [vmem:[#allocation6 + $0x9c] sm:$0xff]
        %v433 = vld [vmem:[#allocation6 + $0xa4] sm:$0xf]
        %v434 = vld [vmem:[#allocation6 + $0xa8] sm:$0xff]
        %v435 = vld [vmem:[#allocation6 + $0xb0] sm:$0xf]
        %v436 = vld [vmem:[#allocation6 + $0xb4] sm:$0xff]
        %v437 = vld [vmem:[#allocation6 + $0xbc] sm:$0xf]
        %v438 = vld [vmem:[#allocation8] sm:$0x7]
        %v440 = vlaneseq
        %v441 = vshrl.u32 %v440, 7
        %v442 = vsub.s32 0, %v441
        %v443 = vrot.slane %v438, %v442
        %v444 = vlaneseq
        %v445 = vshrl.u32 %v444, 7
        %v446 = vsub.s32 1, %v445
        %v447 = vrot.slane %v438, %v446
        %v448 = vlaneseq
        %v449 = vshrl.u32 %v448, 7
        %v450 = vsub.s32 2, %v449
        %v451 = vrot.slane %v438, %v450
        %v487 = vunpack.c.l.b16 %v406
        %v488 = vunpack.c.h.b16 %v406
        %v489 = vunpack.c.l.b16 %v407
        %v490 = vunpack.c.l.b16 %v408
        %v491 = vunpack.c.h.b16 %v408
        %v492 = vunpack.c.l.b16 %v409
        %v493 = vunpack.c.l.b16 %v410
        %v494 = vunpack.c.h.b16 %v410
        %v495 = vunpack.c.l.b16 %v411
        %v496 = vunpack.c.l.b16 %v412
        %v497 = vunpack.c.h.b16 %v412
        %v498 = vunpack.c.l.b16 %v413
        %v499 = vunpack.c.l.b16 %v414
        %v500 = vunpack.c.h.b16 %v414
        %v501 = vunpack.c.l.b16 %v415
        %v502 = vunpack.c.l.b16 %v416
        %v503 = vunpack.c.h.b16 %v416
        %v504 = vunpack.c.l.b16 %v417
        %v505 = vunpack.c.l.b16 %v418
        %v506 = vunpack.c.h.b16 %v418
        %v507 = vunpack.c.l.b16 %v419
        %v508 = vunpack.c.l.b16 %v420
        %v509 = vunpack.c.h.b16 %v420
        %v510 = vunpack.c.l.b16 %v421
        %v511 = vunpack.c.l.b16 %v422
        %v512 = vunpack.c.h.b16 %v422
        %v513 = vunpack.c.l.b16 %v423
        %v514 = vunpack.c.l.b16 %v424
        %v515 = vunpack.c.h.b16 %v424
        %v516 = vunpack.c.l.b16 %v425
        %v517 = vunpack.c.l.b16 %v426
        %v518 = vunpack.c.h.b16 %v426
        %v519 = vunpack.c.l.b16 %v427
        %v520 = vunpack.c.l.b16 %v428
        %v521 = vunpack.c.h.b16 %v428
        %v522 = vunpack.c.l.b16 %v429
        %v523 = vunpack.c.l.b16 %v430
        %v524 = vunpack.c.h.b16 %v430
        %v525 = vunpack.c.l.b16 %v431
        %v526 = vunpack.c.l.b16 %v432
        %v527 = vunpack.c.h.b16 %v432
        %v528 = vunpack.c.l.b16 %v433
        %v529 = vunpack.c.l.b16 %v434
        %v530 = vunpack.c.h.b16 %v434
        %v531 = vunpack.c.l.b16 %v435
        %v532 = vunpack.c.l.b16 %v436
        %v533 = vunpack.c.h.b16 %v436
        %v534 = vunpack.c.l.b16 %v437
        %v535 = vpack.c.b16 %v490, %v487
        %v536 = vpack.c.b16 %v491, %v488
        %v537 = vpack.c.b16 %v492, %v489
        %v538 = vpack.c.b16 %v496, %v493
        %v539 = vpack.c.b16 %v497, %v494
        %v540 = vpack.c.b16 %v498, %v495
        %v541 = vpack.c.b16 %v502, %v499
        %v542 = vpack.c.b16 %v503, %v500
        %v543 = vpack.c.b16 %v504, %v501
        %v544 = vpack.c.b16 %v508, %v505
        %v545 = vpack.c.b16 %v509, %v506
        %v546 = vpack.c.b16 %v510, %v507
        %v547 = vpack.c.b16 %v514, %v511
        %v548 = vpack.c.b16 %v515, %v512
        %v549 = vpack.c.b16 %v516, %v513
        %v550 = vpack.c.b16 %v520, %v517
        %v551 = vpack.c.b16 %v521, %v518
        %v552 = vpack.c.b16 %v522, %v519
        %v553 = vpack.c.b16 %v526, %v523
        %v554 = vpack.c.b16 %v527, %v524
        %v555 = vpack.c.b16 %v528, %v525
        %v556 = vpack.c.b16 %v532, %v529
        %v557 = vpack.c.b16 %v533, %v530
        %v558 = vpack.c.b16 %v534, %v531
        %583 = vmatprep.subr.bf16.mxu0 %v557
        %584 = vmatpush1.bf16.msra.mxu0 %v556
        %585 = vmatprep.subr.bf16.mxu0 %v554
        %586 = vmatpush1.bf16.msra.mxu0 %v553
        %587 = vmatprep.subr.bf16.mxu0 %v551
        %588 = vmatpush1.bf16.msra.mxu0 %v550
        %589 = vmatprep.subr.bf16.mxu0 %v548
        %590 = vmatpush1.bf16.msra.mxu0 %v547
        %591 = vmatprep.subr.bf16.mxu0 %v545
        %592 = vmatpush1.bf16.msra.mxu0 %v544
        %593 = vmatprep.subr.bf16.mxu0 %v542
        %594 = vmatpush1.bf16.msra.mxu0 %v541
        %595 = vmatprep.subr.bf16.mxu0 %v539
        %596 = vmatpush1.bf16.msra.mxu0 %v538
        %597 = vmatprep.subr.bf16.mxu0 %v536
        %598 = vmatpush1.bf16.msra.mxu0 %v535
        %599 = vmatprep.subr.bf16.mxu0 0
        %600 = vmatpush2.bf16.msra.mxu0 0
        %601 = vmatprep.subr.bf16.mxu0 0
        %602 = vmatpush2.bf16.msra.mxu0 0
        %603 = vmatprep.subr.bf16.mxu0 0
        %604 = vmatpush2.bf16.msra.mxu0 0
        %605 = vmatprep.subr.bf16.mxu0 0
        %606 = vmatpush2.bf16.msra.mxu0 0
        %607 = vmatprep.subr.bf16.mxu0 0
        %608 = vmatpush2.bf16.msra.mxu0 0
        %609 = vmatprep.subr.bf16.mxu0 0
        %610 = vmatpush2.bf16.msra.mxu0 0
        %611 = vmatprep.subr.bf16.mxu0 0
        %612 = vmatpush2.bf16.msra.mxu0 0
        %613 = vmatprep.subr.bf16.mxu0 0
        %614 = vmatpush2.bf16.msra.mxu0 0
        %615 = vmatprep.mubr.bf16.mxu0 0
        %616 = vmatmul.mubr.bf16.gmra.mxu0 %v404
        %v617 = vpop.f32.mrf.mxu0
        %v618 = vadd.f32 %v443, %v617
        %v619 = vpop.f32.mrf.mxu0
        %v620 = vadd.f32 %v447, %v619
        %v621 = vpop.f32.mrf.mxu0
        %v622 = vadd.f32 %v443, %v621
        %v623 = vpop.f32.mrf.mxu0
        %v624 = vadd.f32 %v447, %v623
        %625 = vmatprep.mubr.bf16.mxu0 0
        %626 = vmatmul.mubr.bf16.gmra.mxu0 %v405
        %v627 = vpop.f32.mrf.mxu0
        %v628 = vadd.f32 %v443, %v627
        %v629 = vpop.f32.mrf.mxu0
        %v630 = vadd.f32 %v447, %v629
        %v631 = vpop.f32.mrf.mxu0
        %v632 = vadd.f32 %v443, %v631
        %v633 = vpop.f32.mrf.mxu0
        %v634 = vadd.f32 %v447, %v633
        %635 = vdwg.mxu0
        %636 = vmatprep.subr.bf16.mxu0 0
        %637 = vmatpush1.bf16.msra.mxu0 %v558
        %638 = vmatprep.subr.bf16.mxu0 0
        %639 = vmatpush1.bf16.msra.mxu0 %v555
        %640 = vmatprep.subr.bf16.mxu0 0
        %641 = vmatpush1.bf16.msra.mxu0 %v552
        %642 = vmatprep.subr.bf16.mxu0 0
        %643 = vmatpush1.bf16.msra.mxu0 %v549
        %644 = vmatprep.subr.bf16.mxu0 0
        %645 = vmatpush1.bf16.msra.mxu0 %v546
        %646 = vmatprep.subr.bf16.mxu0 0
        %647 = vmatpush1.bf16.msra.mxu0 %v543
        %648 = vmatprep.subr.bf16.mxu0 0
        %649 = vmatpush1.bf16.msra.mxu0 %v540
        %650 = vmatprep.subr.bf16.mxu0 0
        %651 = vmatpush1.bf16.msra.mxu0 %v537
        %652 = vmatprep.subr.bf16.mxu0 0
        %653 = vmatpush2.bf16.msra.mxu0 0
        %654 = vmatprep.subr.bf16.mxu0 0
        %655 = vmatpush2.bf16.msra.mxu0 0
        %656 = vmatprep.subr.bf16.mxu0 0
        %657 = vmatpush2.bf16.msra.mxu0 0
        %658 = vmatprep.subr.bf16.mxu0 0
        %659 = vmatpush2.bf16.msra.mxu0 0
        %660 = vmatprep.subr.bf16.mxu0 0
        %661 = vmatpush2.bf16.msra.mxu0 0
        %662 = vmatprep.subr.bf16.mxu0 0
        %663 = vmatpush2.bf16.msra.mxu0 0
        %664 = vmatprep.subr.bf16.mxu0 0
        %665 = vmatpush2.bf16.msra.mxu0 0
        %666 = vmatprep.subr.bf16.mxu0 0
        %667 = vmatpush2.bf16.msra.mxu0 0
        %668 = vmatprep.mubr.bf16.mxu0 0
        %669 = vmatmul.mubr.bf16.gmra.mxu0 %v404
        %v670 = vpop.f32.mrf.mxu0
        %v671 = vadd.f32 %v451, %v670
        %v672 = vpop.f32.mrf.mxu0
        %v673 = vpop.f32.mrf.mxu0
        %v674 = vadd.f32 %v451, %v673
        %v675 = vpop.f32.mrf.mxu0
        %676 = vmatprep.mubr.bf16.mxu0 0
        %677 = vmatmul.mubr.bf16.gmra.mxu0 %v405
        %v678 = vpop.f32.mrf.mxu0
        %v679 = vadd.f32 %v451, %v678
        %v680 = vpop.f32.mrf.mxu0
        %v681 = vpop.f32.mrf.mxu0
        %v682 = vadd.f32 %v451, %v681
        %v683 = vpop.f32.mrf.mxu0
        %684 = vdwg.mxu0
        %v685 = vpack.c.bf16 %v622, %v618
        %v686 = vpack.c.bf16 %v624, %v620
        %v687 = vpack.c.bf16 %v674, %v671
        %v688 = vpack.c.bf16 %v632, %v628
        %v689 = vpack.c.bf16 %v634, %v630
        %v690 = vpack.c.bf16 %v682, %v679
        %vm691 = vcmask 261120
        %v693 = vsel %vm691, %v685, 0
        %v696 = vsel %vm691, %v686, 0
        %698 = vmatprep.subr.bf16.mxu0 0
        %699 = vmatpush1.bf16.xpose.msra.mxu0 0
        %700 = vmatprep.subr.bf16.mxu0 0
        %701 = vmatpush1.bf16.xpose.msra.mxu0 0
        %702 = vmatprep.subr.bf16.mxu0 0
        %703 = vmatpush1.bf16.xpose.msra.mxu0 0
        %704 = vmatprep.subr.bf16.mxu0 0
        %705 = vmatpush1.bf16.xpose.msra.mxu0 0
        %706 = vmatprep.subr.bf16.mxu0 0
        %707 = vmatpush1.bf16.xpose.msra.mxu0 0
        %708 = vmatprep.subr.bf16.mxu0 0
        %709 = vmatpush1.bf16.xpose.msra.mxu0 0
        %710 = vmatprep.subr.bf16.mxu0 0
        %711 = vmatpush1.bf16.xpose.msra.mxu0 0
        %712 = vmatprep.subr.bf16.mxu0 0
        %713 = vmatpush1.bf16.xpose.msra.mxu0 %v696
        %714 = vmatprep.subr.bf16.mxu0 0
        %715 = vmatpush2.bf16.xpose.msra.mxu0 0
        %716 = vmatprep.subr.bf16.mxu0 0
        %717 = vmatpush2.bf16.xpose.msra.mxu0 0
        %718 = vmatprep.subr.bf16.mxu0 0
        %719 = vmatpush2.bf16.xpose.msra.mxu0 0
        %720 = vmatprep.subr.bf16.mxu0 0
        %721 = vmatpush2.bf16.xpose.msra.mxu0 0
        %722 = vmatprep.subr.bf16.mxu0 0
        %723 = vmatpush2.bf16.xpose.msra.mxu0 0
        %724 = vmatprep.subr.bf16.mxu0 0
        %725 = vmatpush2.bf16.xpose.msra.mxu0 0
        %726 = vmatprep.subr.bf16.mxu0 0
        %727 = vmatpush2.bf16.xpose.msra.mxu0 0
        %728 = vmatprep.subr.bf16.mxu0 0
        %729 = vmatpush2.bf16.xpose.msra.mxu0 0
        %730 = vmatprep.mubr.bf16.mxu0 0
        %731 = vmatmul.mubr.bf16.gmra.mxu0 %v693
        %v732 = vpop.f32.mrf.mxu0
        %v733 = vadd.f32 0.0, %v732
        %v734 = vpop.f32.mrf.mxu0
        %v735 = vpop.f32.mrf.mxu0
        %v736 = vadd.f32 0.0, %v735
        %v737 = vpop.f32.mrf.mxu0
        %738 = vdwg.mxu0
        %v740 = vsel %vm691, %v688, 0
        %v743 = vsel %vm691, %v689, 0
        %745 = vmatprep.subr.bf16.mxu0 0
        %746 = vmatpush1.bf16.xpose.msra.mxu0 0
        %747 = vmatprep.subr.bf16.mxu0 0
        %748 = vmatpush1.bf16.xpose.msra.mxu0 0
        %749 = vmatprep.subr.bf16.mxu0 0
        %750 = vmatpush1.bf16.xpose.msra.mxu0 0
        %751 = vmatprep.subr.bf16.mxu0 0
        %752 = vmatpush1.bf16.xpose.msra.mxu0 0
        %753 = vmatprep.subr.bf16.mxu0 0
        %754 = vmatpush1.bf16.xpose.msra.mxu0 0
        %755 = vmatprep.subr.bf16.mxu0 0
        %756 = vmatpush1.bf16.xpose.msra.mxu0 0
        %757 = vmatprep.subr.bf16.mxu0 0
        %758 = vmatpush1.bf16.xpose.msra.mxu0 0
        %759 = vmatprep.subr.bf16.mxu0 0
        %760 = vmatpush1.bf16.xpose.msra.mxu0 %v743
        %761 = vmatprep.subr.bf16.mxu0 0
        %762 = vmatpush2.bf16.xpose.msra.mxu0 0
        %763 = vmatprep.subr.bf16.mxu0 0
        %764 = vmatpush2.bf16.xpose.msra.mxu0 0
        %765 = vmatprep.subr.bf16.mxu0 0
        %766 = vmatpush2.bf16.xpose.msra.mxu0 0
        %767 = vmatprep.subr.bf16.mxu0 0
        %768 = vmatpush2.bf16.xpose.msra.mxu0 0
        %769 = vmatprep.subr.bf16.mxu0 0
        %770 = vmatpush2.bf16.xpose.msra.mxu0 0
        %771 = vmatprep.subr.bf16.mxu0 0
        %772 = vmatpush2.bf16.xpose.msra.mxu0 0
        %773 = vmatprep.subr.bf16.mxu0 0
        %774 = vmatpush2.bf16.xpose.msra.mxu0 0
        %775 = vmatprep.subr.bf16.mxu0 0
        %776 = vmatpush2.bf16.xpose.msra.mxu0 0
        %777 = vmatprep.mubr.bf16.mxu0 0
        %778 = vmatmul.mubr.bf16.gmra.mxu0 %v740
        %v779 = vpop.f32.mrf.mxu0
        %v780 = vadd.f32 0.0, %v779
        %v781 = vpop.f32.mrf.mxu0
        %v782 = vpop.f32.mrf.mxu0
        %v783 = vadd.f32 0.0, %v782
        %v784 = vpop.f32.mrf.mxu0
        %785 = vdwg.mxu0
        %vm786 = vcmask 130048
        %v787 = vsel %vm786, %v733, -inf
        %788 = vmax.xlane.f32.xlu0 %v787
        %v789 = vpop.xlane.xlu0 %788
        %v790 = vsel %vm786, %v736, -inf
        %791 = vmax.xlane.f32.xlu0 %v790
        %v792 = vpop.xlane.xlu0 %791
        %v793 = vsel %vm786, %v780, -inf
        %794 = vmax.xlane.f32.xlu0 %v793
        %v795 = vpop.xlane.xlu0 %794
        %v796 = vsel %vm786, %v783, -inf
        %797 = vmax.xlane.f32.xlu0 %v796
        %v798 = vpop.xlane.xlu0 %797
        %v799 = vsub.f32 %v733, %v789
        %v800 = vsub.f32 %v736, %v792
        %v801 = vsub.f32 %v780, %v795
        %v802 = vsub.f32 %v783, %v798
        %v803 = vmul.f32 %v799, 1.442695
        %v804 = vpow.pop %v803
        %v805 = vmul.f32 %v800, 1.442695
        %v806 = vpow.pop %v805
        %v807 = vmul.f32 %v801, 1.442695
        %v808 = vpow.pop %v807
        %v809 = vmul.f32 %v802, 1.442695
        %v810 = vpow.pop %v809
        %v811 = vsel %vm786, %v804, 0.0
        %812 = vadd.xlane.f32.xlu0 %v811
        %v813 = vpop.xlane.xlu0 %812
        %v814 = vsel %vm786, %v806, 0.0
        %815 = vadd.xlane.f32.xlu0 %v814
        %v816 = vpop.xlane.xlu0 %815
        %v817 = vsel %vm786, %v808, 0.0
        %818 = vadd.xlane.f32.xlu0 %v817
        %v819 = vpop.xlane.xlu0 %818
        %v820 = vsel %vm786, %v810, 0.0
        %821 = vadd.xlane.f32.xlu0 %v820
        %v822 = vpop.xlane.xlu0 %821
        %v823 = vrcp.pop %v813
        %v824 = vmul.f32 %v804, %v823
        %v825 = vrcp.pop %v816
        %v826 = vmul.f32 %v806, %v825
        %v827 = vrcp.pop %v819
        %v828 = vmul.f32 %v808, %v827
        %v829 = vrcp.pop %v822
        %v830 = vmul.f32 %v810, %v829
        %v831 = vpack.c.bf16 %v826, %v824
        %v832 = vpack.c.bf16 %v830, %v828
        %v834 = vsel %vm786, %v831, 0
        %836 = vmatprep.subr.bf16.mxu0 0
        %837 = vmatpush1.bf16.msra.mxu0 0
        %838 = vmatprep.subr.bf16.mxu0 0
        %839 = vmatpush1.bf16.msra.mxu0 0
        %840 = vmatprep.subr.bf16.mxu0 0
        %841 = vmatpush1.bf16.msra.mxu0 0
        %842 = vmatprep.subr.bf16.mxu0 0
        %843 = vmatpush1.bf16.msra.mxu0 0
        %844 = vmatprep.subr.bf16.mxu0 0
        %845 = vmatpush1.bf16.msra.mxu0 0
        %846 = vmatprep.subr.bf16.mxu0 0
        %847 = vmatpush1.bf16.msra.mxu0 0
        %848 = vmatprep.subr.bf16.mxu0 0
        %849 = vmatpush1.bf16.msra.mxu0 0
        %850 = vmatprep.subr.bf16.mxu0 0
        %851 = vmatpush1.bf16.msra.mxu0 %v687
        %852 = vmatprep.subr.bf16.mxu0 0
        %853 = vmatpush2.bf16.msra.mxu0 0
        %854 = vmatprep.subr.bf16.mxu0 0
        %855 = vmatpush2.bf16.msra.mxu0 0
        %856 = vmatprep.subr.bf16.mxu0 0
        %857 = vmatpush2.bf16.msra.mxu0 0
        %858 = vmatprep.subr.bf16.mxu0 0
        %859 = vmatpush2.bf16.msra.mxu0 0
        %860 = vmatprep.subr.bf16.mxu0 0
        %861 = vmatpush2.bf16.msra.mxu0 0
        %862 = vmatprep.subr.bf16.mxu0 0
        %863 = vmatpush2.bf16.msra.mxu0 0
        %864 = vmatprep.subr.bf16.mxu0 0
        %865 = vmatpush2.bf16.msra.mxu0 0
        %866 = vmatprep.subr.bf16.mxu0 0
        %867 = vmatpush2.bf16.msra.mxu0 0
        %868 = vmatprep.mubr.bf16.mxu0 0
        %869 = vmatmul.mubr.bf16.gmra.mxu0 %v834
        %v870 = vpop.f32.mrf.mxu0
        %v871 = vadd.f32 0.0, %v870
        %v872 = vpop.f32.mrf.mxu0
        %v873 = vpop.f32.mrf.mxu0
        %v874 = vadd.f32 0.0, %v873
        %v875 = vpop.f32.mrf.mxu0
        %876 = vdwg.mxu0
        %v878 = vsel %vm786, %v832, 0
        %880 = vmatprep.subr.bf16.mxu0 0
        %881 = vmatpush1.bf16.msra.mxu0 0
        %882 = vmatprep.subr.bf16.mxu0 0
        %883 = vmatpush1.bf16.msra.mxu0 0
        %884 = vmatprep.subr.bf16.mxu0 0
        %885 = vmatpush1.bf16.msra.mxu0 0
        %886 = vmatprep.subr.bf16.mxu0 0
        %887 = vmatpush1.bf16.msra.mxu0 0
        %888 = vmatprep.subr.bf16.mxu0 0
        %889 = vmatpush1.bf16.msra.mxu0 0
        %890 = vmatprep.subr.bf16.mxu0 0
        %891 = vmatpush1.bf16.msra.mxu0 0
        %892 = vmatprep.subr.bf16.mxu0 0
        %893 = vmatpush1.bf16.msra.mxu0 0
        %894 = vmatprep.subr.bf16.mxu0 0
        %895 = vmatpush1.bf16.msra.mxu0 %v690
        %896 = vmatprep.subr.bf16.mxu0 0
        %897 = vmatpush2.bf16.msra.mxu0 0
        %898 = vmatprep.subr.bf16.mxu0 0
        %899 = vmatpush2.bf16.msra.mxu0 0
        %900 = vmatprep.subr.bf16.mxu0 0
        %901 = vmatpush2.bf16.msra.mxu0 0
        %902 = vmatprep.subr.bf16.mxu0 0
        %903 = vmatpush2.bf16.msra.mxu0 0
        %904 = vmatprep.subr.bf16.mxu0 0
        %905 = vmatpush2.bf16.msra.mxu0 0
        %906 = vmatprep.subr.bf16.mxu0 0
        %907 = vmatpush2.bf16.msra.mxu0 0
        %908 = vmatprep.subr.bf16.mxu0 0
        %909 = vmatpush2.bf16.msra.mxu0 0
        %910 = vmatprep.subr.bf16.mxu0 0
        %911 = vmatpush2.bf16.msra.mxu0 0
        %912 = vmatprep.mubr.bf16.mxu0 0
        %913 = vmatmul.mubr.bf16.gmra.mxu0 %v878
        %v914 = vpop.f32.mrf.mxu0
        %v915 = vadd.f32 0.0, %v914
        %v916 = vpop.f32.mrf.mxu0
        %v917 = vpop.f32.mrf.mxu0
        %v918 = vadd.f32 0.0, %v917
        %v919 = vpop.f32.mrf.mxu0
        %920 = vdwg.mxu0
        %v921 = vpack.c.bf16 %v874, %v871
        %v922 = vpack.c.bf16 %v918, %v915
        %v925 = vunpack.c.l.b16 %v921
        %v926 = vunpack.c.h.b16 %v921
        %v927 = vunpack.c.l.b16 %v922
        %v928 = vunpack.c.h.b16 %v922
        %v929 = vpack.c.b16 %v925, %v925
        %v930 = vpack.c.b16 %v926, %v926
        %v931 = vpack.c.b16 %v927, %v927
        %v932 = vpack.c.b16 %v928, %v928
        %vm937 = vcmask 257024
        %938 = vst.msk [vmem:[#allocation2] sm:$0xf] %vm937, %v929
        %939 = vst.msk [vmem:[#allocation2 + $0x4] sm:$0xf] %vm937, %v930
        %940 = vst.msk [vmem:[#allocation2 + $0x8] sm:$0xf] %vm937, %v931
        %941 = vst.msk [vmem:[#allocation2 + $0xc] sm:$0xf] %vm937, %v932
        %943 = vrot.lane.b32.xlu0 %v685, 96
        %v944 = vpop.permute.xlu0 %943
        %946 = vrot.lane.b32.xlu0 %v686, 96
        %v947 = vpop.permute.xlu0 %946
        %v949 = vsel %vm691, %v944, 0
        %v952 = vsel %vm691, %v947, 0
        %954 = vmatprep.subr.bf16.mxu0 0
        %955 = vmatpush1.bf16.xpose.msra.mxu0 0
        %956 = vmatprep.subr.bf16.mxu0 0
        %957 = vmatpush1.bf16.xpose.msra.mxu0 0
        %958 = vmatprep.subr.bf16.mxu0 0
        %959 = vmatpush1.bf16.xpose.msra.mxu0 0
        %960 = vmatprep.subr.bf16.mxu0 0
        %961 = vmatpush1.bf16.xpose.msra.mxu0 0
        %962 = vmatprep.subr.bf16.mxu0 0
        %963 = vmatpush1.bf16.xpose.msra.mxu0 0
        %964 = vmatprep.subr.bf16.mxu0 0
        %965 = vmatpush1.bf16.xpose.msra.mxu0 0
        %966 = vmatprep.subr.bf16.mxu0 0
        %967 = vmatpush1.bf16.xpose.msra.mxu0 0
        %968 = vmatprep.subr.bf16.mxu0 0
        %969 = vmatpush1.bf16.xpose.msra.mxu0 %v952
        %970 = vmatprep.subr.bf16.mxu0 0
        %971 = vmatpush2.bf16.xpose.msra.mxu0 0
        %972 = vmatprep.subr.bf16.mxu0 0
        %973 = vmatpush2.bf16.xpose.msra.mxu0 0
        %974 = vmatprep.subr.bf16.mxu0 0
        %975 = vmatpush2.bf16.xpose.msra.mxu0 0
        %976 = vmatprep.subr.bf16.mxu0 0
        %977 = vmatpush2.bf16.xpose.msra.mxu0 0
        %978 = vmatprep.subr.bf16.mxu0 0
        %979 = vmatpush2.bf16.xpose.msra.mxu0 0
        %980 = vmatprep.subr.bf16.mxu0 0
        %981 = vmatpush2.bf16.xpose.msra.mxu0 0
        %982 = vmatprep.subr.bf16.mxu0 0
        %983 = vmatpush2.bf16.xpose.msra.mxu0 0
        %984 = vmatprep.subr.bf16.mxu0 0
        %985 = vmatpush2.bf16.xpose.msra.mxu0 0
        %986 = vmatprep.mubr.bf16.mxu0 0
        %987 = vmatmul.mubr.bf16.gmra.mxu0 %v949
        %v988 = vpop.f32.mrf.mxu0
        %v989 = vadd.f32 0.0, %v988
        %v990 = vpop.f32.mrf.mxu0
        %v991 = vpop.f32.mrf.mxu0
        %v992 = vadd.f32 0.0, %v991
        %v993 = vpop.f32.mrf.mxu0
        %994 = vdwg.mxu0
        %996 = vrot.lane.b32.xlu0 %v688, 96
        %v997 = vpop.permute.xlu0 %996
        %999 = vrot.lane.b32.xlu0 %v689, 96
        %v1000 = vpop.permute.xlu0 %999
        %v1002 = vsel %vm691, %v997, 0
        %v1005 = vsel %vm691, %v1000, 0
        %1007 = vmatprep.subr.bf16.mxu0 0
        %1008 = vmatpush1.bf16.xpose.msra.mxu0 0
        %1009 = vmatprep.subr.bf16.mxu0 0
        %1010 = vmatpush1.bf16.xpose.msra.mxu0 0
        %1011 = vmatprep.subr.bf16.mxu0 0
        %1012 = vmatpush1.bf16.xpose.msra.mxu0 0
        %1013 = vmatprep.subr.bf16.mxu0 0
        %1014 = vmatpush1.bf16.xpose.msra.mxu0 0
        %1015 = vmatprep.subr.bf16.mxu0 0
        %1016 = vmatpush1.bf16.xpose.msra.mxu0 0
        %1017 = vmatprep.subr.bf16.mxu0 0
        %1018 = vmatpush1.bf16.xpose.msra.mxu0 0
        %1019 = vmatprep.subr.bf16.mxu0 0
        %1020 = vmatpush1.bf16.xpose.msra.mxu0 0
        %1021 = vmatprep.subr.bf16.mxu0 0
        %1022 = vmatpush1.bf16.xpose.msra.mxu0 %v1005
        %1023 = vmatprep.subr.bf16.mxu0 0
        %1024 = vmatpush2.bf16.xpose.msra.mxu0 0
        %1025 = vmatprep.subr.bf16.mxu0 0
        %1026 = vmatpush2.bf16.xpose.msra.mxu0 0
        %1027 = vmatprep.subr.bf16.mxu0 0
        %1028 = vmatpush2.bf16.xpose.msra.mxu0 0
        %1029 = vmatprep.subr.bf16.mxu0 0
        %1030 = vmatpush2.bf16.xpose.msra.mxu0 0
        %1031 = vmatprep.subr.bf16.mxu0 0
        %1032 = vmatpush2.bf16.xpose.msra.mxu0 0
        %1033 = vmatprep.subr.bf16.mxu0 0
        %1034 = vmatpush2.bf16.xpose.msra.mxu0 0
        %1035 = vmatprep.subr.bf16.mxu0 0
        %1036 = vmatpush2.bf16.xpose.msra.mxu0 0
        %1037 = vmatprep.subr.bf16.mxu0 0
        %1038 = vmatpush2.bf16.xpose.msra.mxu0 0
        %1039 = vmatprep.mubr.bf16.mxu0 0
        %1040 = vmatmul.mubr.bf16.gmra.mxu0 %v1002
        %v1041 = vpop.f32.mrf.mxu0
        %v1042 = vadd.f32 0.0, %v1041
        %v1043 = vpop.f32.mrf.mxu0
        %v1044 = vpop.f32.mrf.mxu0
        %v1045 = vadd.f32 0.0, %v1044
        %v1046 = vpop.f32.mrf.mxu0
        %1047 = vdwg.mxu0
        %v1048 = vsel %vm786, %v989, -inf
        %1049 = vmax.xlane.f32.xlu0 %v1048
        %v1050 = vpop.xlane.xlu0 %1049
        %v1051 = vsel %vm786, %v992, -inf
        %1052 = vmax.xlane.f32.xlu0 %v1051
        %v1053 = vpop.xlane.xlu0 %1052
        %v1054 = vsel %vm786, %v1042, -inf
        %1055 = vmax.xlane.f32.xlu0 %v1054
        %v1056 = vpop.xlane.xlu0 %1055
        %v1057 = vsel %vm786, %v1045, -inf
        %1058 = vmax.xlane.f32.xlu0 %v1057
        %v1059 = vpop.xlane.xlu0 %1058
        %v1060 = vsub.f32 %v989, %v1050
        %v1061 = vsub.f32 %v992, %v1053
        %v1062 = vsub.f32 %v1042, %v1056
        %v1063 = vsub.f32 %v1045, %v1059
        %v1064 = vmul.f32 %v1060, 1.442695
        %v1065 = vpow.pop %v1064
        %v1066 = vmul.f32 %v1061, 1.442695
        %v1067 = vpow.pop %v1066
        %v1068 = vmul.f32 %v1062, 1.442695
        %v1069 = vpow.pop %v1068
        %v1070 = vmul.f32 %v1063, 1.442695
        %v1071 = vpow.pop %v1070
        %v1072 = vsel %vm786, %v1065, 0.0
        %1073 = vadd.xlane.f32.xlu0 %v1072
        %v1074 = vpop.xlane.xlu0 %1073
        %v1075 = vsel %vm786, %v1067, 0.0
        %1076 = vadd.xlane.f32.xlu0 %v1075
        %v1077 = vpop.xlane.xlu0 %1076
        %v1078 = vsel %vm786, %v1069, 0.0
        %1079 = vadd.xlane.f32.xlu0 %v1078
        %v1080 = vpop.xlane.xlu0 %1079
        %v1081 = vsel %vm786, %v1071, 0.0
        %1082 = vadd.xlane.f32.xlu0 %v1081
        %v1083 = vpop.xlane.xlu0 %1082
        %v1084 = vrcp.pop %v1074
        %v1085 = vmul.f32 %v1065, %v1084
        %v1086 = vrcp.pop %v1077
        %v1087 = vmul.f32 %v1067, %v1086
        %v1088 = vrcp.pop %v1080
        %v1089 = vmul.f32 %v1069, %v1088
        %v1090 = vrcp.pop %v1083
        %v1091 = vmul.f32 %v1071, %v1090
        %v1092 = vpack.c.bf16 %v1087, %v1085
        %v1093 = vpack.c.bf16 %v1091, %v1089
        %1095 = vrot.lane.b32.xlu0 %v687, 96
        %v1096 = vpop.permute.xlu0 %1095
        %v1099 = vsel %vm786, %v1092, 0
        %1101 = vmatprep.subr.bf16.mxu0 0
        %1102 = vmatpush1.bf16.msra.mxu0 0
        %1103 = vmatprep.subr.bf16.mxu0 0
        %1104 = vmatpush1.bf16.msra.mxu0 0
        %1105 = vmatprep.subr.bf16.mxu0 0
        %1106 = vmatpush1.bf16.msra.mxu0 0
        %1107 = vmatprep.subr.bf16.mxu0 0
        %1108 = vmatpush1.bf16.msra.mxu0 0
        %1109 = vmatprep.subr.bf16.mxu0 0
        %1110 = vmatpush1.bf16.msra.mxu0 0
        %1111 = vmatprep.subr.bf16.mxu0 0
        %1112 = vmatpush1.bf16.msra.mxu0 0
        %1113 = vmatprep.subr.bf16.mxu0 0
        %1114 = vmatpush1.bf16.msra.mxu0 0
        %1115 = vmatprep.subr.bf16.mxu0 0
        %1116 = vmatpush1.bf16.msra.mxu0 %v1096
        %1117 = vmatprep.subr.bf16.mxu0 0
        %1118 = vmatpush2.bf16.msra.mxu0 0
        %1119 = vmatprep.subr.bf16.mxu0 0
        %1120 = vmatpush2.bf16.msra.mxu0 0
        %1121 = vmatprep.subr.bf16.mxu0 0
        %1122 = vmatpush2.bf16.msra.mxu0 0
        %1123 = vmatprep.subr.bf16.mxu0 0
        %1124 = vmatpush2.bf16.msra.mxu0 0
        %1125 = vmatprep.subr.bf16.mxu0 0
        %1126 = vmatpush2.bf16.msra.mxu0 0
        %1127 = vmatprep.subr.bf16.mxu0 0
        %1128 = vmatpush2.bf16.msra.mxu0 0
        %1129 = vmatprep.subr.bf16.mxu0 0
        %1130 = vmatpush2.bf16.msra.mxu0 0
        %1131 = vmatprep.subr.bf16.mxu0 0
        %1132 = vmatpush2.bf16.msra.mxu0 0
        %1133 = vmatprep.mubr.bf16.mxu0 0
        %1134 = vmatmul.mubr.bf16.gmra.mxu0 %v1099
        %v1135 = vpop.f32.mrf.mxu0
        %v1136 = vadd.f32 0.0, %v1135
        %v1137 = vpop.f32.mrf.mxu0
        %v1138 = vpop.f32.mrf.mxu0
        %v1139 = vadd.f32 0.0, %v1138
        %v1140 = vpop.f32.mrf.mxu0
        %1141 = vdwg.mxu0
        %1143 = vrot.lane.b32.xlu0 %v690, 96
        %v1144 = vpop.permute.xlu0 %1143
        %v1147 = vsel %vm786, %v1093, 0
        %1149 = vmatprep.subr.bf16.mxu0 0
        %1150 = vmatpush1.bf16.msra.mxu0 0
        %1151 = vmatprep.subr.bf16.mxu0 0
        %1152 = vmatpush1.bf16.msra.mxu0 0
        %1153 = vmatprep.subr.bf16.mxu0 0
        %1154 = vmatpush1.bf16.msra.mxu0 0
        %1155 = vmatprep.subr.bf16.mxu0 0
        %1156 = vmatpush1.bf16.msra.mxu0 0
        %1157 = vmatprep.subr.bf16.mxu0 0
        %1158 = vmatpush1.bf16.msra.mxu0 0
        %1159 = vmatprep.subr.bf16.mxu0 0
        %1160 = vmatpush1.bf16.msra.mxu0 0
        %1161 = vmatprep.subr.bf16.mxu0 0
        %1162 = vmatpush1.bf16.msra.mxu0 0
        %1163 = vmatprep.subr.bf16.mxu0 0
        %1164 = vmatpush1.bf16.msra.mxu0 %v1144
        %1165 = vmatprep.subr.bf16.mxu0 0
        %1166 = vmatpush2.bf16.msra.mxu0 0
        %1167 = vmatprep.subr.bf16.mxu0 0
        %1168 = vmatpush2.bf16.msra.mxu0 0
        %1169 = vmatprep.subr.bf16.mxu0 0
        %1170 = vmatpush2.bf16.msra.mxu0 0
        %1171 = vmatprep.subr.bf16.mxu0 0
        %1172 = vmatpush2.bf16.msra.mxu0 0
        %1173 = vmatprep.subr.bf16.mxu0 0
        %1174 = vmatpush2.bf16.msra.mxu0 0
        %1175 = vmatprep.subr.bf16.mxu0 0
        %1176 = vmatpush2.bf16.msra.mxu0 0
        %1177 = vmatprep.subr.bf16.mxu0 0
        %1178 = vmatpush2.bf16.msra.mxu0 0
        %1179 = vmatprep.subr.bf16.mxu0 0
        %1180 = vmatpush2.bf16.msra.mxu0 0
        %1181 = vmatprep.mubr.bf16.mxu0 0
        %1182 = vmatmul.mubr.bf16.gmra.mxu0 %v1147
        %v1183 = vpop.f32.mrf.mxu0
        %v1184 = vadd.f32 0.0, %v1183
        %v1185 = vpop.f32.mrf.mxu0
        %v1186 = vpop.f32.mrf.mxu0
        %v1187 = vadd.f32 0.0, %v1186
        %v1188 = vpop.f32.mrf.mxu0
        %1189 = vdwg.mxu0
        %v1190 = vpack.c.bf16 %v1139, %v1136
        %v1191 = vpack.c.bf16 %v1187, %v1184
        %v1194 = vunpack.c.l.b16 %v1190
        %v1195 = vunpack.c.h.b16 %v1190
        %v1196 = vunpack.c.l.b16 %v1191
        %v1197 = vunpack.c.h.b16 %v1191
        %v1198 = vpack.c.b16 %v1194, %v1194
        %v1199 = vpack.c.b16 %v1195, %v1195
        %v1200 = vpack.c.b16 %v1196, %v1196
        %v1201 = vpack.c.b16 %v1197, %v1197
        %1202 = vrot.lane.b32.xlu0 %v1198, 32
        %v1203 = vpop.permute.xlu0 %1202
        %1204 = vrot.lane.b32.xlu0 %v1199, 32
        %v1205 = vpop.permute.xlu0 %1204
        %1206 = vrot.lane.b32.xlu0 %v1200, 32
        %v1207 = vpop.permute.xlu0 %1206
        %1208 = vrot.lane.b32.xlu0 %v1201, 32
        %v1209 = vpop.permute.xlu0 %1208
        %vm1214 = vcmask 519424
        %1215 = vst.msk [vmem:[#allocation2] sm:$0xf] %vm1214, %v1203
        %1216 = vst.msk [vmem:[#allocation2 + $0x4] sm:$0xf] %vm1214, %v1205
        %1217 = vst.msk [vmem:[#allocation2 + $0x8] sm:$0xf] %vm1214, %v1207
        %1218 = vst.msk [vmem:[#allocation2 + $0xc] sm:$0xf] %vm1214, %v1209
        %1219 = vrot.lane.b32.xlu0 %v685, 64
        %v1220 = vpop.permute.xlu0 %1219
        %1221 = vrot.lane.b32.xlu0 %v686, 64
        %v1222 = vpop.permute.xlu0 %1221
        %v1224 = vsel %vm691, %v1220, 0
        %v1227 = vsel %vm691, %v1222, 0
        %1229 = vmatprep.subr.bf16.mxu0 0
        %1230 = vmatpush1.bf16.xpose.msra.mxu0 0
        %1231 = vmatprep.subr.bf16.mxu0 0
        %1232 = vmatpush1.bf16.xpose.msra.mxu0 0
        %1233 = vmatprep.subr.bf16.mxu0 0
        %1234 = vmatpush1.bf16.xpose.msra.mxu0 0
        %1235 = vmatprep.subr.bf16.mxu0 0
        %1236 = vmatpush1.bf16.xpose.msra.mxu0 0
        %1237 = vmatprep.subr.bf16.mxu0 0
        %1238 = vmatpush1.bf16.xpose.msra.mxu0 0
        %1239 = vmatprep.subr.bf16.mxu0 0
        %1240 = vmatpush1.bf16.xpose.msra.mxu0 0
        %1241 = vmatprep.subr.bf16.mxu0 0
        %1242 = vmatpush1.bf16.xpose.msra.mxu0 0
        %1243 = vmatprep.subr.bf16.mxu0 0
        %1244 = vmatpush1.bf16.xpose.msra.mxu0 %v1227
        %1245 = vmatprep.subr.bf16.mxu0 0
        %1246 = vmatpush2.bf16.xpose.msra.mxu0 0
        %1247 = vmatprep.subr.bf16.mxu0 0
        %1248 = vmatpush2.bf16.xpose.msra.mxu0 0
        %1249 = vmatprep.subr.bf16.mxu0 0
        %1250 = vmatpush2.bf16.xpose.msra.mxu0 0
        %1251 = vmatprep.subr.bf16.mxu0 0
        %1252 = vmatpush2.bf16.xpose.msra.mxu0 0
        %1253 = vmatprep.subr.bf16.mxu0 0
        %1254 = vmatpush2.bf16.xpose.msra.mxu0 0
        %1255 = vmatprep.subr.bf16.mxu0 0
        %1256 = vmatpush2.bf16.xpose.msra.mxu0 0
        %1257 = vmatprep.subr.bf16.mxu0 0
        %1258 = vmatpush2.bf16.xpose.msra.mxu0 0
        %1259 = vmatprep.subr.bf16.mxu0 0
        %1260 = vmatpush2.bf16.xpose.msra.mxu0 0
        %1261 = vmatprep.mubr.bf16.mxu0 0
        %1262 = vmatmul.mubr.bf16.gmra.mxu0 %v1224
        %v1263 = vpop.f32.mrf.mxu0
        %v1264 = vadd.f32 0.0, %v1263
        %v1265 = vpop.f32.mrf.mxu0
        %v1266 = vpop.f32.mrf.mxu0
        %v1267 = vadd.f32 0.0, %v1266
        %v1268 = vpop.f32.mrf.mxu0
        %1269 = vdwg.mxu0
        %1270 = vrot.lane.b32.xlu0 %v688, 64
        %v1271 = vpop.permute.xlu0 %1270
        %1272 = vrot.lane.b32.xlu0 %v689, 64
        %v1273 = vpop.permute.xlu0 %1272
        %v1275 = vsel %vm691, %v1271, 0
        %v1278 = vsel %vm691, %v1273, 0
        %1280 = vmatprep.subr.bf16.mxu0 0
        %1281 = vmatpush1.bf16.xpose.msra.mxu0 0
        %1282 = vmatprep.subr.bf16.mxu0 0
        %1283 = vmatpush1.bf16.xpose.msra.mxu0 0
        %1284 = vmatprep.subr.bf16.mxu0 0
        %1285 = vmatpush1.bf16.xpose.msra.mxu0 0
        %1286 = vmatprep.subr.bf16.mxu0 0
        %1287 = vmatpush1.bf16.xpose.msra.mxu0 0
        %1288 = vmatprep.subr.bf16.mxu0 0
        %1289 = vmatpush1.bf16.xpose.msra.mxu0 0
        %1290 = vmatprep.subr.bf16.mxu0 0
        %1291 = vmatpush1.bf16.xpose.msra.mxu0 0
        %1292 = vmatprep.subr.bf16.mxu0 0
        %1293 = vmatpush1.bf16.xpose.msra.mxu0 0
        %1294 = vmatprep.subr.bf16.mxu0 0
        %1295 = vmatpush1.bf16.xpose.msra.mxu0 %v1278
        %1296 = vmatprep.subr.bf16.mxu0 0
        %1297 = vmatpush2.bf16.xpose.msra.mxu0 0
        %1298 = vmatprep.subr.bf16.mxu0 0
        %1299 = vmatpush2.bf16.xpose.msra.mxu0 0
        %1300 = vmatprep.subr.bf16.mxu0 0
        %1301 = vmatpush2.bf16.xpose.msra.mxu0 0
        %1302 = vmatprep.subr.bf16.mxu0 0
        %1303 = vmatpush2.bf16.xpose.msra.mxu0 0
        %1304 = vmatprep.subr.bf16.mxu0 0
        %1305 = vmatpush2.bf16.xpose.msra.mxu0 0
        %1306 = vmatprep.subr.bf16.mxu0 0
        %1307 = vmatpush2.bf16.xpose.msra.mxu0 0
        %1308 = vmatprep.subr.bf16.mxu0 0
        %1309 = vmatpush2.bf16.xpose.msra.mxu0 0
        %1310 = vmatprep.subr.bf16.mxu0 0
        %1311 = vmatpush2.bf16.xpose.msra.mxu0 0
        %1312 = vmatprep.mubr.bf16.mxu0 0
        %1313 = vmatmul.mubr.bf16.gmra.mxu0 %v1275
        %v1314 = vpop.f32.mrf.mxu0
        %v1315 = vadd.f32 0.0, %v1314
        %v1316 = vpop.f32.mrf.mxu0
        %v1317 = vpop.f32.mrf.mxu0
        %v1318 = vadd.f32 0.0, %v1317
        %v1319 = vpop.f32.mrf.mxu0
        %1320 = vdwg.mxu0
        %v1321 = vsel %vm786, %v1264, -inf
        %1322 = vmax.xlane.f32.xlu0 %v1321
        %v1323 = vpop.xlane.xlu0 %1322
        %v1324 = vsel %vm786, %v1267, -inf
        %1325 = vmax.xlane.f32.xlu0 %v1324
        %v1326 = vpop.xlane.xlu0 %1325
        %v1327 = vsel %vm786, %v1315, -inf
        %1328 = vmax.xlane.f32.xlu0 %v1327
        %v1329 = vpop.xlane.xlu0 %1328
        %v1330 = vsel %vm786, %v1318, -inf
        %1331 = vmax.xlane.f32.xlu0 %v1330
        %v1332 = vpop.xlane.xlu0 %1331
        %v1333 = vsub.f32 %v1264, %v1323
        %v1334 = vsub.f32 %v1267, %v1326
        %v1335 = vsub.f32 %v1315, %v1329
        %v1336 = vsub.f32 %v1318, %v1332
        %v1337 = vmul.f32 %v1333, 1.442695
        %v1338 = vpow.pop %v1337
        %v1339 = vmul.f32 %v1334, 1.442695
        %v1340 = vpow.pop %v1339
        %v1341 = vmul.f32 %v1335, 1.442695
        %v1342 = vpow.pop %v1341
        %v1343 = vmul.f32 %v1336, 1.442695
        %v1344 = vpow.pop %v1343
        %v1345 = vsel %vm786, %v1338, 0.0
        %1346 = vadd.xlane.f32.xlu0 %v1345
        %v1347 = vpop.xlane.xlu0 %1346
        %v1348 = vsel %vm786, %v1340, 0.0
        %1349 = vadd.xlane.f32.xlu0 %v1348
        %v1350 = vpop.xlane.xlu0 %1349
        %v1351 = vsel %vm786, %v1342, 0.0
        %1352 = vadd.xlane.f32.xlu0 %v1351
        %v1353 = vpop.xlane.xlu0 %1352
        %v1354 = vsel %vm786, %v1344, 0.0
        %1355 = vadd.xlane.f32.xlu0 %v1354
        %v1356 = vpop.xlane.xlu0 %1355
        %v1357 = vrcp.pop %v1347
        %v1358 = vmul.f32 %v1338, %v1357
        %v1359 = vrcp.pop %v1350
        %v1360 = vmul.f32 %v1340, %v1359
        %v1361 = vrcp.pop %v1353
        %v1362 = vmul.f32 %v1342, %v1361
        %v1363 = vrcp.pop %v1356
        %v1364 = vmul.f32 %v1344, %v1363
        %v1365 = vpack.c.bf16 %v1360, %v1358
        %v1366 = vpack.c.bf16 %v1364, %v1362
        %1367 = vrot.lane.b32.xlu0 %v687, 64
        %v1368 = vpop.permute.xlu0 %1367
        %v1371 = vsel %vm786, %v1365, 0
        %1373 = vmatprep.subr.bf16.mxu0 0
        %1374 = vmatpush1.bf16.msra.mxu0 0
        %1375 = vmatprep.subr.bf16.mxu0 0
        %1376 = vmatpush1.bf16.msra.mxu0 0
        %1377 = vmatprep.subr.bf16.mxu0 0
        %1378 = vmatpush1.bf16.msra.mxu0 0
        %1379 = vmatprep.subr.bf16.mxu0 0
        %1380 = vmatpush1.bf16.msra.mxu0 0
        %1381 = vmatprep.subr.bf16.mxu0 0
        %1382 = vmatpush1.bf16.msra.mxu0 0
        %1383 = vmatprep.subr.bf16.mxu0 0
        %1384 = vmatpush1.bf16.msra.mxu0 0
        %1385 = vmatprep.subr.bf16.mxu0 0
        %1386 = vmatpush1.bf16.msra.mxu0 0
        %1387 = vmatprep.subr.bf16.mxu0 0
        %1388 = vmatpush1.bf16.msra.mxu0 %v1368
        %1389 = vmatprep.subr.bf16.mxu0 0
        %1390 = vmatpush2.bf16.msra.mxu0 0
        %1391 = vmatprep.subr.bf16.mxu0 0
        %1392 = vmatpush2.bf16.msra.mxu0 0
        %1393 = vmatprep.subr.bf16.mxu0 0
        %1394 = vmatpush2.bf16.msra.mxu0 0
        %1395 = vmatprep.subr.bf16.mxu0 0
        %1396 = vmatpush2.bf16.msra.mxu0 0
        %1397 = vmatprep.subr.bf16.mxu0 0
        %1398 = vmatpush2.bf16.msra.mxu0 0
        %1399 = vmatprep.subr.bf16.mxu0 0
        %1400 = vmatpush2.bf16.msra.mxu0 0
        %1401 = vmatprep.subr.bf16.mxu0 0
        %1402 = vmatpush2.bf16.msra.mxu0 0
        %1403 = vmatprep.subr.bf16.mxu0 0
        %1404 = vmatpush2.bf16.msra.mxu0 0
        %1405 = vmatprep.mubr.bf16.mxu0 0
        %1406 = vmatmul.mubr.bf16.gmra.mxu0 %v1371
        %v1407 = vpop.f32.mrf.mxu0
        %v1408 = vadd.f32 0.0, %v1407
        %v1409 = vpop.f32.mrf.mxu0
        %v1410 = vpop.f32.mrf.mxu0
        %v1411 = vadd.f32 0.0, %v1410
        %v1412 = vpop.f32.mrf.mxu0
        %1413 = vdwg.mxu0
        %1414 = vrot.lane.b32.xlu0 %v690, 64
        %v1415 = vpop.permute.xlu0 %1414
        %v1418 = vsel %vm786, %v1366, 0
        %1420 = vmatprep.subr.bf16.mxu0 0
        %1421 = vmatpush1.bf16.msra.mxu0 0
        %1422 = vmatprep.subr.bf16.mxu0 0
        %1423 = vmatpush1.bf16.msra.mxu0 0
        %1424 = vmatprep.subr.bf16.mxu0 0
        %1425 = vmatpush1.bf16.msra.mxu0 0
        %1426 = vmatprep.subr.bf16.mxu0 0
        %1427 = vmatpush1.bf16.msra.mxu0 0
        %1428 = vmatprep.subr.bf16.mxu0 0
        %1429 = vmatpush1.bf16.msra.mxu0 0
        %1430 = vmatprep.subr.bf16.mxu0 0
        %1431 = vmatpush1.bf16.msra.mxu0 0
        %1432 = vmatprep.subr.bf16.mxu0 0
        %1433 = vmatpush1.bf16.msra.mxu0 0
        %1434 = vmatprep.subr.bf16.mxu0 0
        %1435 = vmatpush1.bf16.msra.mxu0 %v1415
        %1436 = vmatprep.subr.bf16.mxu0 0
        %1437 = vmatpush2.bf16.msra.mxu0 0
        %1438 = vmatprep.subr.bf16.mxu0 0
        %1439 = vmatpush2.bf16.msra.mxu0 0
        %1440 = vmatprep.subr.bf16.mxu0 0
        %1441 = vmatpush2.bf16.msra.mxu0 0
        %1442 = vmatprep.subr.bf16.mxu0 0
        %1443 = vmatpush2.bf16.msra.mxu0 0
        %1444 = vmatprep.subr.bf16.mxu0 0
        %1445 = vmatpush2.bf16.msra.mxu0 0
        %1446 = vmatprep.subr.bf16.mxu0 0
        %1447 = vmatpush2.bf16.msra.mxu0 0
        %1448 = vmatprep.subr.bf16.mxu0 0
        %1449 = vmatpush2.bf16.msra.mxu0 0
        %1450 = vmatprep.subr.bf16.mxu0 0
        %1451 = vmatpush2.bf16.msra.mxu0 0
        %1452 = vmatprep.mubr.bf16.mxu0 0
        %1453 = vmatmul.mubr.bf16.gmra.mxu0 %v1418
        %v1454 = vpop.f32.mrf.mxu0
        %v1455 = vadd.f32 0.0, %v1454
        %v1456 = vpop.f32.mrf.mxu0
        %v1457 = vpop.f32.mrf.mxu0
        %v1458 = vadd.f32 0.0, %v1457
        %v1459 = vpop.f32.mrf.mxu0
        %1460 = vdwg.mxu0
        %v1461 = vpack.c.bf16 %v1411, %v1408
        %v1462 = vpack.c.bf16 %v1458, %v1455
        %v1465 = vunpack.c.l.b16 %v1461
        %v1466 = vunpack.c.h.b16 %v1461
        %v1467 = vunpack.c.l.b16 %v1462
        %v1468 = vunpack.c.h.b16 %v1462
        %v1469 = vpack.c.b16 %v1465, %v1465
        %v1470 = vpack.c.b16 %v1466, %v1466
        %v1471 = vpack.c.b16 %v1467, %v1467
        %v1472 = vpack.c.b16 %v1468, %v1468
        %1473 = vrot.lane.b32.xlu0 %v1469, 64
        %v1474 = vpop.permute.xlu0 %1473
        %1475 = vrot.lane.b32.xlu0 %v1470, 64
        %v1476 = vpop.permute.xlu0 %1475
        %1477 = vrot.lane.b32.xlu0 %v1471, 64
        %v1478 = vpop.permute.xlu0 %1477
        %1479 = vrot.lane.b32.xlu0 %v1472, 64
        %v1480 = vpop.permute.xlu0 %1479
        %vm1485 = vcmask 781824
        %1486 = vst.msk [vmem:[#allocation2] sm:$0xf] %vm1485, %v1474
        %1487 = vst.msk [vmem:[#allocation2 + $0x4] sm:$0xf] %vm1485, %v1476
        %1488 = vst.msk [vmem:[#allocation2 + $0x8] sm:$0xf] %vm1485, %v1478
        %1489 = vst.msk [vmem:[#allocation2 + $0xc] sm:$0xf] %vm1485, %v1480
        %1490 = vrot.lane.b32.xlu0 %v685, 32
        %v1491 = vpop.permute.xlu0 %1490
        %1492 = vrot.lane.b32.xlu0 %v686, 32
        %v1493 = vpop.permute.xlu0 %1492
        %v1495 = vsel %vm691, %v1491, 0
        %v1498 = vsel %vm691, %v1493, 0
        %1500 = vmatprep.subr.bf16.mxu0 0
        %1501 = vmatpush1.bf16.xpose.msra.mxu0 0
        %1502 = vmatprep.subr.bf16.mxu0 0
        %1503 = vmatpush1.bf16.xpose.msra.mxu0 0
        %1504 = vmatprep.subr.bf16.mxu0 0
        %1505 = vmatpush1.bf16.xpose.msra.mxu0 0
        %1506 = vmatprep.subr.bf16.mxu0 0
        %1507 = vmatpush1.bf16.xpose.msra.mxu0 0
        %1508 = vmatprep.subr.bf16.mxu0 0
        %1509 = vmatpush1.bf16.xpose.msra.mxu0 0
        %1510 = vmatprep.subr.bf16.mxu0 0
        %1511 = vmatpush1.bf16.xpose.msra.mxu0 0
        %1512 = vmatprep.subr.bf16.mxu0 0
        %1513 = vmatpush1.bf16.xpose.msra.mxu0 0
        %1514 = vmatprep.subr.bf16.mxu0 0
        %1515 = vmatpush1.bf16.xpose.msra.mxu0 %v1498
        %1516 = vmatprep.subr.bf16.mxu0 0
        %1517 = vmatpush2.bf16.xpose.msra.mxu0 0
        %1518 = vmatprep.subr.bf16.mxu0 0
        %1519 = vmatpush2.bf16.xpose.msra.mxu0 0
        %1520 = vmatprep.subr.bf16.mxu0 0
        %1521 = vmatpush2.bf16.xpose.msra.mxu0 0
        %1522 = vmatprep.subr.bf16.mxu0 0
        %1523 = vmatpush2.bf16.xpose.msra.mxu0 0
        %1524 = vmatprep.subr.bf16.mxu0 0
        %1525 = vmatpush2.bf16.xpose.msra.mxu0 0
        %1526 = vmatprep.subr.bf16.mxu0 0
        %1527 = vmatpush2.bf16.xpose.msra.mxu0 0
        %1528 = vmatprep.subr.bf16.mxu0 0
        %1529 = vmatpush2.bf16.xpose.msra.mxu0 0
        %1530 = vmatprep.subr.bf16.mxu0 0
        %1531 = vmatpush2.bf16.xpose.msra.mxu0 0
        %1532 = vmatprep.mubr.bf16.mxu0 0
        %1533 = vmatmul.mubr.bf16.gmra.mxu0 %v1495
        %v1534 = vpop.f32.mrf.mxu0
        %v1535 = vadd.f32 0.0, %v1534
        %v1536 = vpop.f32.mrf.mxu0
        %v1537 = vpop.f32.mrf.mxu0
        %v1538 = vadd.f32 0.0, %v1537
        %v1539 = vpop.f32.mrf.mxu0
        %1540 = vdwg.mxu0
        %1541 = vrot.lane.b32.xlu0 %v688, 32
        %v1542 = vpop.permute.xlu0 %1541
        %1543 = vrot.lane.b32.xlu0 %v689, 32
        %v1544 = vpop.permute.xlu0 %1543
        %v1546 = vsel %vm691, %v1542, 0
        %v1549 = vsel %vm691, %v1544, 0
        %1551 = vmatprep.subr.bf16.mxu0 0
        %1552 = vmatpush1.bf16.xpose.msra.mxu0 0
        %1553 = vmatprep.subr.bf16.mxu0 0
        %1554 = vmatpush1.bf16.xpose.msra.mxu0 0
        %1555 = vmatprep.subr.bf16.mxu0 0
        %1556 = vmatpush1.bf16.xpose.msra.mxu0 0
        %1557 = vmatprep.subr.bf16.mxu0 0
        %1558 = vmatpush1.bf16.xpose.msra.mxu0 0
        %1559 = vmatprep.subr.bf16.mxu0 0
        %1560 = vmatpush1.bf16.xpose.msra.mxu0 0
        %1561 = vmatprep.subr.bf16.mxu0 0
        %1562 = vmatpush1.bf16.xpose.msra.mxu0 0
        %1563 = vmatprep.subr.bf16.mxu0 0
        %1564 = vmatpush1.bf16.xpose.msra.mxu0 0
        %1565 = vmatprep.subr.bf16.mxu0 0
        %1566 = vmatpush1.bf16.xpose.msra.mxu0 %v1549
        %1567 = vmatprep.subr.bf16.mxu0 0
        %1568 = vmatpush2.bf16.xpose.msra.mxu0 0
        %1569 = vmatprep.subr.bf16.mxu0 0
        %1570 = vmatpush2.bf16.xpose.msra.mxu0 0
        %1571 = vmatprep.subr.bf16.mxu0 0
        %1572 = vmatpush2.bf16.xpose.msra.mxu0 0
        %1573 = vmatprep.subr.bf16.mxu0 0
        %1574 = vmatpush2.bf16.xpose.msra.mxu0 0
        %1575 = vmatprep.subr.bf16.mxu0 0
        %1576 = vmatpush2.bf16.xpose.msra.mxu0 0
        %1577 = vmatprep.subr.bf16.mxu0 0
        %1578 = vmatpush2.bf16.xpose.msra.mxu0 0
        %1579 = vmatprep.subr.bf16.mxu0 0
        %1580 = vmatpush2.bf16.xpose.msra.mxu0 0
        %1581 = vmatprep.subr.bf16.mxu0 0
        %1582 = vmatpush2.bf16.xpose.msra.mxu0 0
        %1583 = vmatprep.mubr.bf16.mxu0 0
        %1584 = vmatmul.mubr.bf16.gmra.mxu0 %v1546
        %v1585 = vpop.f32.mrf.mxu0
        %v1586 = vadd.f32 0.0, %v1585
        %v1587 = vpop.f32.mrf.mxu0
        %v1588 = vpop.f32.mrf.mxu0
        %v1589 = vadd.f32 0.0, %v1588
        %v1590 = vpop.f32.mrf.mxu0
        %1591 = vdwg.mxu0
        %v1592 = vsel %vm786, %v1535, -inf
        %1593 = vmax.xlane.f32.xlu0 %v1592
        %v1594 = vpop.xlane.xlu0 %1593
        %v1595 = vsel %vm786, %v1538, -inf
        %1596 = vmax.xlane.f32.xlu0 %v1595
        %v1597 = vpop.xlane.xlu0 %1596
        %v1598 = vsel %vm786, %v1586, -inf
        %1599 = vmax.xlane.f32.xlu0 %v1598
        %v1600 = vpop.xlane.xlu0 %1599
        %v1601 = vsel %vm786, %v1589, -inf
        %1602 = vmax.xlane.f32.xlu0 %v1601
        %v1603 = vpop.xlane.xlu0 %1602
        %v1604 = vsub.f32 %v1535, %v1594
        %v1605 = vsub.f32 %v1538, %v1597
        %v1606 = vsub.f32 %v1586, %v1600
        %v1607 = vsub.f32 %v1589, %v1603
        %v1608 = vmul.f32 %v1604, 1.442695
        %v1609 = vpow.pop %v1608
        %v1610 = vmul.f32 %v1605, 1.442695
        %v1611 = vpow.pop %v1610
        %v1612 = vmul.f32 %v1606, 1.442695
        %v1613 = vpow.pop %v1612
        %v1614 = vmul.f32 %v1607, 1.442695
        %v1615 = vpow.pop %v1614
        %v1616 = vsel %vm786, %v1609, 0.0
        %1617 = vadd.xlane.f32.xlu0 %v1616
        %v1618 = vpop.xlane.xlu0 %1617
        %v1619 = vsel %vm786, %v1611, 0.0
        %1620 = vadd.xlane.f32.xlu0 %v1619
        %v1621 = vpop.xlane.xlu0 %1620
        %v1622 = vsel %vm786, %v1613, 0.0
        %1623 = vadd.xlane.f32.xlu0 %v1622
        %v1624 = vpop.xlane.xlu0 %1623
        %v1625 = vsel %vm786, %v1615, 0.0
        %1626 = vadd.xlane.f32.xlu0 %v1625
        %v1627 = vpop.xlane.xlu0 %1626
        %v1628 = vrcp.pop %v1618
        %v1629 = vmul.f32 %v1609, %v1628
        %v1630 = vrcp.pop %v1621
        %v1631 = vmul.f32 %v1611, %v1630
        %v1632 = vrcp.pop %v1624
        %v1633 = vmul.f32 %v1613, %v1632
        %v1634 = vrcp.pop %v1627
        %v1635 = vmul.f32 %v1615, %v1634
        %v1636 = vpack.c.bf16 %v1631, %v1629
        %v1637 = vpack.c.bf16 %v1635, %v1633
        %1638 = vrot.lane.b32.xlu0 %v687, 32
        %v1639 = vpop.permute.xlu0 %1638
        %v1642 = vsel %vm786, %v1636, 0
        %1644 = vmatprep.subr.bf16.mxu0 0
        %1645 = vmatpush1.bf16.msra.mxu0 0
        %1646 = vmatprep.subr.bf16.mxu0 0
        %1647 = vmatpush1.bf16.msra.mxu0 0
        %1648 = vmatprep.subr.bf16.mxu0 0
        %1649 = vmatpush1.bf16.msra.mxu0 0
        %1650 = vmatprep.subr.bf16.mxu0 0
        %1651 = vmatpush1.bf16.msra.mxu0 0
        %1652 = vmatprep.subr.bf16.mxu0 0
        %1653 = vmatpush1.bf16.msra.mxu0 0
        %1654 = vmatprep.subr.bf16.mxu0 0
        %1655 = vmatpush1.bf16.msra.mxu0 0
        %1656 = vmatprep.subr.bf16.mxu0 0
        %1657 = vmatpush1.bf16.msra.mxu0 0
        %1658 = vmatprep.subr.bf16.mxu0 0
        %1659 = vmatpush1.bf16.msra.mxu0 %v1639
        %1660 = vmatprep.subr.bf16.mxu0 0
        %1661 = vmatpush2.bf16.msra.mxu0 0
        %1662 = vmatprep.subr.bf16.mxu0 0
        %1663 = vmatpush2.bf16.msra.mxu0 0
        %1664 = vmatprep.subr.bf16.mxu0 0
        %1665 = vmatpush2.bf16.msra.mxu0 0
        %1666 = vmatprep.subr.bf16.mxu0 0
        %1667 = vmatpush2.bf16.msra.mxu0 0
        %1668 = vmatprep.subr.bf16.mxu0 0
        %1669 = vmatpush2.bf16.msra.mxu0 0
        %1670 = vmatprep.subr.bf16.mxu0 0
        %1671 = vmatpush2.bf16.msra.mxu0 0
        %1672 = vmatprep.subr.bf16.mxu0 0
        %1673 = vmatpush2.bf16.msra.mxu0 0
        %1674 = vmatprep.subr.bf16.mxu0 0
        %1675 = vmatpush2.bf16.msra.mxu0 0
        %1676 = vmatprep.mubr.bf16.mxu0 0
        %1677 = vmatmul.mubr.bf16.gmra.mxu0 %v1642
        %v1678 = vpop.f32.mrf.mxu0
        %v1679 = vadd.f32 0.0, %v1678
        %v1680 = vpop.f32.mrf.mxu0
        %v1681 = vpop.f32.mrf.mxu0
        %v1682 = vadd.f32 0.0, %v1681
        %v1683 = vpop.f32.mrf.mxu0
        %1684 = vdwg.mxu0
        %1685 = vrot.lane.b32.xlu0 %v690, 32
        %v1686 = vpop.permute.xlu0 %1685
        %v1689 = vsel %vm786, %v1637, 0
        %1691 = vmatprep.subr.bf16.mxu0 0
        %1692 = vmatpush1.bf16.msra.mxu0 0
        %1693 = vmatprep.subr.bf16.mxu0 0
        %1694 = vmatpush1.bf16.msra.mxu0 0
        %1695 = vmatprep.subr.bf16.mxu0 0
        %1696 = vmatpush1.bf16.msra.mxu0 0
        %1697 = vmatprep.subr.bf16.mxu0 0
        %1698 = vmatpush1.bf16.msra.mxu0 0
        %1699 = vmatprep.subr.bf16.mxu0 0
        %1700 = vmatpush1.bf16.msra.mxu0 0
        %1701 = vmatprep.subr.bf16.mxu0 0
        %1702 = vmatpush1.bf16.msra.mxu0 0
        %1703 = vmatprep.subr.bf16.mxu0 0
        %1704 = vmatpush1.bf16.msra.mxu0 0
        %1705 = vmatprep.subr.bf16.mxu0 0
        %1706 = vmatpush1.bf16.msra.mxu0 %v1686
        %1707 = vmatprep.subr.bf16.mxu0 0
        %1708 = vmatpush2.bf16.msra.mxu0 0
        %1709 = vmatprep.subr.bf16.mxu0 0
        %1710 = vmatpush2.bf16.msra.mxu0 0
        %1711 = vmatprep.subr.bf16.mxu0 0
        %1712 = vmatpush2.bf16.msra.mxu0 0
        %1713 = vmatprep.subr.bf16.mxu0 0
        %1714 = vmatpush2.bf16.msra.mxu0 0
        %1715 = vmatprep.subr.bf16.mxu0 0
        %1716 = vmatpush2.bf16.msra.mxu0 0
        %1717 = vmatprep.subr.bf16.mxu0 0
        %1718 = vmatpush2.bf16.msra.mxu0 0
        %1719 = vmatprep.subr.bf16.mxu0 0
        %1720 = vmatpush2.bf16.msra.mxu0 0
        %1721 = vmatprep.subr.bf16.mxu0 0
        %1722 = vmatpush2.bf16.msra.mxu0 0
        %1723 = vmatprep.mubr.bf16.mxu0 0
        %1724 = vmatmul.mubr.bf16.gmra.mxu0 %v1689
        %v1725 = vpop.f32.mrf.mxu0
        %v1726 = vadd.f32 0.0, %v1725
        %v1727 = vpop.f32.mrf.mxu0
        %v1728 = vpop.f32.mrf.mxu0
        %v1729 = vadd.f32 0.0, %v1728
        %v1730 = vpop.f32.mrf.mxu0
        %1731 = vdwg.mxu0
        %v1732 = vpack.c.bf16 %v1682, %v1679
        %v1733 = vpack.c.bf16 %v1729, %v1726
        %v1736 = vunpack.c.l.b16 %v1732
        %v1737 = vunpack.c.h.b16 %v1732
        %v1738 = vunpack.c.l.b16 %v1733
        %v1739 = vunpack.c.h.b16 %v1733
        %v1740 = vpack.c.b16 %v1736, %v1736
        %v1741 = vpack.c.b16 %v1737, %v1737
        %v1742 = vpack.c.b16 %v1738, %v1738
        %v1743 = vpack.c.b16 %v1739, %v1739
        %1744 = vrot.lane.b32.xlu0 %v1740, 96
        %v1745 = vpop.permute.xlu0 %1744
        %1746 = vrot.lane.b32.xlu0 %v1741, 96
        %v1747 = vpop.permute.xlu0 %1746
        %1748 = vrot.lane.b32.xlu0 %v1742, 96
        %v1749 = vpop.permute.xlu0 %1748
        %1750 = vrot.lane.b32.xlu0 %v1743, 96
        %v1751 = vpop.permute.xlu0 %1750
        %vm1756 = vcmask 1044224
        %1757 = vst.msk [vmem:[#allocation2] sm:$0xf] %vm1756, %v1745
        %1758 = vst.msk [vmem:[#allocation2 + $0x4] sm:$0xf] %vm1756, %v1747
        %1759 = vst.msk [vmem:[#allocation2 + $0x8] sm:$0xf] %vm1756, %v1749
        %1760 = vst.msk [vmem:[#allocation2 + $0xc] sm:$0xf] %vm1756, %v1751
        %v1761 = vld [vmem:[#allocation2] sm:$0xf]
        %v1762 = vld [vmem:[#allocation2 + $0x4] sm:$0xf]
        %v1763 = vld [vmem:[#allocation2 + $0x8] sm:$0xf]
        %v1764 = vld [vmem:[#allocation2 + $0xc] sm:$0xf]
        %v1765 = vld [vmem:[#allocation9] sm:$0xf]
        %v1766 = vld [vmem:[#allocation9 + $0x4] sm:$0xf]
        %v1767 = vld [vmem:[#allocation9 + $0x8] sm:$0xf]
        %v1768 = vld [vmem:[#allocation9 + $0xc] sm:$0xf]
        %v1769 = vld [vmem:[#allocation9 + $0x10] sm:$0xf]
        %v1770 = vld [vmem:[#allocation9 + $0x14] sm:$0xf]
        %v1771 = vld [vmem:[#allocation9 + $0x18] sm:$0xf]
        %v1772 = vld [vmem:[#allocation9 + $0x1c] sm:$0xf]
        %v1773 = vld [vmem:[#allocation9 + $0x20] sm:$0xf]
        %v1774 = vld [vmem:[#allocation9 + $0x24] sm:$0xf]
        %v1775 = vld [vmem:[#allocation9 + $0x28] sm:$0xf]
        %v1776 = vld [vmem:[#allocation9 + $0x2c] sm:$0xf]
        %v1777 = vld [vmem:[#allocation9 + $0x30] sm:$0xf]
        %v1778 = vld [vmem:[#allocation9 + $0x34] sm:$0xf]
        %v1779 = vld [vmem:[#allocation9 + $0x38] sm:$0xf]
        %v1780 = vld [vmem:[#allocation9 + $0x3c] sm:$0xf]
        %v1781 = vlaneseq
        %v1782 = vshrl.u32 %v1781, 7
        %v1783 = vsub.s32 0, %v1782
        %v1784 = vrot.slane %v399, %v1783
        %v1789 = vunpack.c.l.b16 %v1761
        %v1790 = vunpack.c.l.b16 %v1762
        %v1791 = vunpack.c.l.b16 %v1763
        %v1792 = vunpack.c.l.b16 %v1764
        %v1793 = vpack.c.b16 %v1790, %v1789
        %v1794 = vpack.c.b16 %v1792, %v1791
        %v1813 = vunpack.c.l.b16 %v1765
        %v1814 = vunpack.c.l.b16 %v1766
        %v1815 = vunpack.c.l.b16 %v1767
        %v1816 = vunpack.c.l.b16 %v1768
        %v1817 = vunpack.c.l.b16 %v1769
        %v1818 = vunpack.c.l.b16 %v1770
        %v1819 = vunpack.c.l.b16 %v1771
        %v1820 = vunpack.c.l.b16 %v1772
        %v1821 = vunpack.c.l.b16 %v1773
        %v1822 = vunpack.c.l.b16 %v1774
        %v1823 = vunpack.c.l.b16 %v1775
        %v1824 = vunpack.c.l.b16 %v1776
        %v1825 = vunpack.c.l.b16 %v1777
        %v1826 = vunpack.c.l.b16 %v1778
        %v1827 = vunpack.c.l.b16 %v1779
        %v1828 = vunpack.c.l.b16 %v1780
        %v1829 = vpack.c.b16 %v1814, %v1813
        %v1830 = vpack.c.b16 %v1816, %v1815
        %v1831 = vpack.c.b16 %v1818, %v1817
        %v1832 = vpack.c.b16 %v1820, %v1819
        %v1833 = vpack.c.b16 %v1822, %v1821
        %v1834 = vpack.c.b16 %v1824, %v1823
        %v1835 = vpack.c.b16 %v1826, %v1825
        %v1836 = vpack.c.b16 %v1828, %v1827
        %1845 = vmatprep.subr.bf16.mxu0 0
        %1846 = vmatpush1.bf16.msra.mxu0 %v1836
        %1847 = vmatprep.subr.bf16.mxu0 0
        %1848 = vmatpush1.bf16.msra.mxu0 %v1835
        %1849 = vmatprep.subr.bf16.mxu0 0
        %1850 = vmatpush1.bf16.msra.mxu0 %v1834
        %1851 = vmatprep.subr.bf16.mxu0 0
        %1852 = vmatpush1.bf16.msra.mxu0 %v1833
        %1853 = vmatprep.subr.bf16.mxu0 0
        %1854 = vmatpush1.bf16.msra.mxu0 %v1832
        %1855 = vmatprep.subr.bf16.mxu0 0
        %1856 = vmatpush1.bf16.msra.mxu0 %v1831
        %1857 = vmatprep.subr.bf16.mxu0 0
        %1858 = vmatpush1.bf16.msra.mxu0 %v1830
        %1859 = vmatprep.subr.bf16.mxu0 0
        %1860 = vmatpush1.bf16.msra.mxu0 %v1829
        %1861 = vmatprep.subr.bf16.mxu0 0
        %1862 = vmatpush2.bf16.msra.mxu0 0
        %1863 = vmatprep.subr.bf16.mxu0 0
        %1864 = vmatpush2.bf16.msra.mxu0 0
        %1865 = vmatprep.subr.bf16.mxu0 0
        %1866 = vmatpush2.bf16.msra.mxu0 0
        %1867 = vmatprep.subr.bf16.mxu0 0
        %1868 = vmatpush2.bf16.msra.mxu0 0
        %1869 = vmatprep.subr.bf16.mxu0 0
        %1870 = vmatpush2.bf16.msra.mxu0 0
        %1871 = vmatprep.subr.bf16.mxu0 0
        %1872 = vmatpush2.bf16.msra.mxu0 0
        %1873 = vmatprep.subr.bf16.mxu0 0
        %1874 = vmatpush2.bf16.msra.mxu0 0
        %1875 = vmatprep.subr.bf16.mxu0 0
        %1876 = vmatpush2.bf16.msra.mxu0 0
        %1877 = vmatprep.mubr.bf16.mxu0 0
        %1878 = vmatmul.mubr.bf16.gmra.mxu0 %v1793
        %v1879 = vpop.f32.mrf.mxu0
        %v1880 = vadd.f32 %v1784, %v1879
        %v1881 = vpop.f32.mrf.mxu0
        %v1882 = vpop.f32.mrf.mxu0
        %v1883 = vadd.f32 %v1784, %v1882
        %v1884 = vpop.f32.mrf.mxu0
        %1885 = vmatprep.mubr.bf16.mxu0 0
        %1886 = vmatmul.mubr.bf16.gmra.mxu0 %v1794
        %v1887 = vpop.f32.mrf.mxu0
        %v1888 = vadd.f32 %v1784, %v1887
        %v1889 = vpop.f32.mrf.mxu0
        %v1890 = vpop.f32.mrf.mxu0
        %v1891 = vadd.f32 %v1784, %v1890
        %v1892 = vpop.f32.mrf.mxu0
        %1893 = vdwg.mxu0
        %v1894 = vadd.f32 %v1880, %v400
        %v1895 = vadd.f32 %v1883, %v401
        %v1896 = vadd.f32 %v1888, %v402
        %v1897 = vadd.f32 %v1891, %v403
        %1898 = vadd.xlane.f32.xlu0 %v1894
        %v1899 = vpop.xlane.xlu0 %1898
        %1900 = vadd.xlane.f32.xlu0 %v1895
        %v1901 = vpop.xlane.xlu0 %1900
        %1902 = vadd.xlane.f32.xlu0 %v1896
        %v1903 = vpop.xlane.xlu0 %1902
        %1904 = vadd.xlane.f32.xlu0 %v1897
        %v1905 = vpop.xlane.xlu0 %1904
        %v1906 = vrcp.pop 128.0
        %v1907 = vmul.f32 %v1899, %v1906
        %v1908 = vmul.f32 %v1901, %v1906
        %v1909 = vmul.f32 %v1903, %v1906
        %v1910 = vmul.f32 %v1905, %v1906
        %v1911 = vsub.f32 %v1894, %v1907
        %v1912 = vsub.f32 %v1895, %v1908
        %v1913 = vsub.f32 %v1896, %v1909
        %v1914 = vsub.f32 %v1897, %v1910
        %v1915 = vmul.f32 %v1911, %v1911
        %v1916 = vmul.f32 %v1912, %v1912
        %v1917 = vmul.f32 %v1913, %v1913
        %v1918 = vmul.f32 %v1914, %v1914
        %1919 = vadd.xlane.f32.xlu0 %v1915
        %v1920 = vpop.xlane.xlu0 %1919
        %1921 = vadd.xlane.f32.xlu0 %v1916
        %v1922 = vpop.xlane.xlu0 %1921
        %1923 = vadd.xlane.f32.xlu0 %v1917
        %v1924 = vpop.xlane.xlu0 %1923
        %1925 = vadd.xlane.f32.xlu0 %v1918
        %v1926 = vpop.xlane.xlu0 %1925
        %v1927 = vmul.f32 %v1920, %v1906
        %v1928 = vmul.f32 %v1922, %v1906
        %v1929 = vmul.f32 %v1924, %v1906
        %v1930 = vmul.f32 %v1926, %v1906
        %v1931 = vadd.f32 %v1927, 1e-05
        %v1932 = vadd.f32 %v1928, 1e-05
        %v1933 = vadd.f32 %v1929, 1e-05
        %v1934 = vadd.f32 %v1930, 1e-05
        %v1935 = vrsqrt.pop %v1931
        %v1936 = vrsqrt.pop %v1932
        %v1937 = vrsqrt.pop %v1933
        %v1938 = vrsqrt.pop %v1934
        %v1939 = vmul.f32 %v1911, %v1935
        %v1940 = vmul.f32 %v1912, %v1936
        %v1941 = vmul.f32 %v1913, %v1937
        %v1942 = vmul.f32 %v1914, %v1938
        %v1943 = vlaneseq
        %v1944 = vshrl.u32 %v1943, 7
        %v1945 = vsub.s32 2, %v1944
        %v1946 = vrot.slane %v399, %v1945
        %v1947 = vmul.f32 %v1939, %v1946
        %v1948 = vmul.f32 %v1940, %v1946
        %v1949 = vmul.f32 %v1941, %v1946
        %v1950 = vmul.f32 %v1942, %v1946
        %v1951 = vlaneseq
        %v1952 = vshrl.u32 %v1951, 7
        %v1953 = vsub.s32 3, %v1952
        %v1954 = vrot.slane %v399, %v1953
        %v1955 = vadd.f32 %v1947, %v1954
        %v1956 = vadd.f32 %v1948, %v1954
        %v1957 = vadd.f32 %v1949, %v1954
        %v1958 = vadd.f32 %v1950, %v1954
        %v1959 = vpack.c.bf16 %v1956, %v1955
        %v1960 = vpack.c.bf16 %v1958, %v1957
        %v1961 = vld [vmem:[#allocation11] sm:$0xff]
        %v1962 = vld [vmem:[#allocation11 + $0x8] sm:$0xff]
        %v1963 = vld [vmem:[#allocation11 + $0x10] sm:$0xff]
        %v1964 = vld [vmem:[#allocation11 + $0x18] sm:$0xff]
        %v1965 = vld [vmem:[#allocation11 + $0x20] sm:$0xff]
        %v1966 = vld [vmem:[#allocation11 + $0x28] sm:$0xff]
        %v1967 = vld [vmem:[#allocation11 + $0x30] sm:$0xff]
        %v1968 = vld [vmem:[#allocation11 + $0x38] sm:$0xff]
        %v1969 = vld [vmem:[#allocation11 + $0x40] sm:$0xff]
        %v1970 = vld [vmem:[#allocation11 + $0x48] sm:$0xff]
        %v1971 = vld [vmem:[#allocation11 + $0x50] sm:$0xff]
        %v1972 = vld [vmem:[#allocation11 + $0x58] sm:$0xff]
        %v1973 = vld [vmem:[#allocation11 + $0x60] sm:$0xff]
        %v1974 = vld [vmem:[#allocation11 + $0x68] sm:$0xff]
        %v1975 = vld [vmem:[#allocation11 + $0x70] sm:$0xff]
        %v1976 = vld [vmem:[#allocation11 + $0x78] sm:$0xff]
        %v1977 = vld [vmem:[#allocation11 + $0x80] sm:$0xff]
        %v1978 = vld [vmem:[#allocation11 + $0x88] sm:$0xff]
        %v1979 = vld [vmem:[#allocation11 + $0x90] sm:$0xff]
        %v1980 = vld [vmem:[#allocation11 + $0x98] sm:$0xff]
        %v1981 = vld [vmem:[#allocation11 + $0xa0] sm:$0xff]
        %v1982 = vld [vmem:[#allocation11 + $0xa8] sm:$0xff]
        %v1983 = vld [vmem:[#allocation11 + $0xb0] sm:$0xff]
        %v1984 = vld [vmem:[#allocation11 + $0xb8] sm:$0xff]
        %v1985 = vld [vmem:[#allocation11 + $0xc0] sm:$0xff]
        %v1986 = vld [vmem:[#allocation11 + $0xc8] sm:$0xff]
        %v1987 = vld [vmem:[#allocation11 + $0xd0] sm:$0xff]
        %v1988 = vld [vmem:[#allocation11 + $0xd8] sm:$0xff]
        %v1989 = vld [vmem:[#allocation11 + $0xe0] sm:$0xff]
        %v1990 = vld [vmem:[#allocation11 + $0xe8] sm:$0xff]
        %v1991 = vld [vmem:[#allocation11 + $0xf0] sm:$0xff]
        %v1992 = vld [vmem:[#allocation11 + $0xf8] sm:$0xff]
        %v1993 = vld [vmem:[%s5] sm:$0xf]
        %v1995 = vlaneseq
        %v1996 = vshrl.u32 %v1995, 7
        %v1997 = vsub.s32 0, %v1996
        %v1998 = vrot.slane %v1993, %v1997
        %v1999 = vlaneseq
        %v2000 = vshrl.u32 %v1999, 7
        %v2001 = vsub.s32 1, %v2000
        %v2002 = vrot.slane %v1993, %v2001
        %v2003 = vlaneseq
        %v2004 = vshrl.u32 %v2003, 7
        %v2005 = vsub.s32 2, %v2004
        %v2006 = vrot.slane %v1993, %v2005
        %v2007 = vlaneseq
        %v2008 = vshrl.u32 %v2007, 7
        %v2009 = vsub.s32 3, %v2008
        %v2010 = vrot.slane %v1993, %v2009
        %v2047 = vunpack.c.l.b16 %v1961
        %v2048 = vunpack.c.h.b16 %v1961
        %v2049 = vunpack.c.l.b16 %v1962
        %v2050 = vunpack.c.h.b16 %v1962
        %v2051 = vunpack.c.l.b16 %v1963
        %v2052 = vunpack.c.h.b16 %v1963
        %v2053 = vunpack.c.l.b16 %v1964
        %v2054 = vunpack.c.h.b16 %v1964
        %v2055 = vunpack.c.l.b16 %v1965
        %v2056 = vunpack.c.h.b16 %v1965
        %v2057 = vunpack.c.l.b16 %v1966
        %v2058 = vunpack.c.h.b16 %v1966
        %v2059 = vunpack.c.l.b16 %v1967
        %v2060 = vunpack.c.h.b16 %v1967
        %v2061 = vunpack.c.l.b16 %v1968
        %v2062 = vunpack.c.h.b16 %v1968
        %v2063 = vunpack.c.l.b16 %v1969
        %v2064 = vunpack.c.h.b16 %v1969
        %v2065 = vunpack.c.l.b16 %v1970
        %v2066 = vunpack.c.h.b16 %v1970
        %v2067 = vunpack.c.l.b16 %v1971
        %v2068 = vunpack.c.h.b16 %v1971
        %v2069 = vunpack.c.l.b16 %v1972
        %v2070 = vunpack.c.h.b16 %v1972
        %v2071 = vunpack.c.l.b16 %v1973
        %v2072 = vunpack.c.h.b16 %v1973
        %v2073 = vunpack.c.l.b16 %v1974
        %v2074 = vunpack.c.h.b16 %v1974
        %v2075 = vunpack.c.l.b16 %v1975
        %v2076 = vunpack.c.h.b16 %v1975
        %v2077 = vunpack.c.l.b16 %v1976
        %v2078 = vunpack.c.h.b16 %v1976
        %v2079 = vunpack.c.l.b16 %v1977
        %v2080 = vunpack.c.h.b16 %v1977
        %v2081 = vunpack.c.l.b16 %v1978
        %v2082 = vunpack.c.h.b16 %v1978
        %v2083 = vunpack.c.l.b16 %v1979
        %v2084 = vunpack.c.h.b16 %v1979
        %v2085 = vunpack.c.l.b16 %v1980
        %v2086 = vunpack.c.h.b16 %v1980
        %v2087 = vunpack.c.l.b16 %v1981
        %v2088 = vunpack.c.h.b16 %v1981
        %v2089 = vunpack.c.l.b16 %v1982
        %v2090 = vunpack.c.h.b16 %v1982
        %v2091 = vunpack.c.l.b16 %v1983
        %v2092 = vunpack.c.h.b16 %v1983
        %v2093 = vunpack.c.l.b16 %v1984
        %v2094 = vunpack.c.h.b16 %v1984
        %v2095 = vunpack.c.l.b16 %v1985
        %v2096 = vunpack.c.h.b16 %v1985
        %v2097 = vunpack.c.l.b16 %v1986
        %v2098 = vunpack.c.h.b16 %v1986
        %v2099 = vunpack.c.l.b16 %v1987
        %v2100 = vunpack.c.h.b16 %v1987
        %v2101 = vunpack.c.l.b16 %v1988
        %v2102 = vunpack.c.h.b16 %v1988
        %v2103 = vunpack.c.l.b16 %v1989
        %v2104 = vunpack.c.h.b16 %v1989
        %v2105 = vunpack.c.l.b16 %v1990
        %v2106 = vunpack.c.h.b16 %v1990
        %v2107 = vunpack.c.l.b16 %v1991
        %v2108 = vunpack.c.h.b16 %v1991
        %v2109 = vunpack.c.l.b16 %v1992
        %v2110 = vunpack.c.h.b16 %v1992
        %v2111 = vpack.c.b16 %v2051, %v2047
        %v2112 = vpack.c.b16 %v2052, %v2048
        %v2113 = vpack.c.b16 %v2053, %v2049
        %v2114 = vpack.c.b16 %v2054, %v2050
        %v2115 = vpack.c.b16 %v2059, %v2055
        %v2116 = vpack.c.b16 %v2060, %v2056
        %v2117 = vpack.c.b16 %v2061, %v2057
        %v2118 = vpack.c.b16 %v2062, %v2058
        %v2119 = vpack.c.b16 %v2067, %v2063
        %v2120 = vpack.c.b16 %v2068, %v2064
        %v2121 = vpack.c.b16 %v2069, %v2065
        %v2122 = vpack.c.b16 %v2070, %v2066
        %v2123 = vpack.c.b16 %v2075, %v2071
        %v2124 = vpack.c.b16 %v2076, %v2072
        %v2125 = vpack.c.b16 %v2077, %v2073
        %v2126 = vpack.c.b16 %v2078, %v2074
        %v2127 = vpack.c.b16 %v2083, %v2079
        %v2128 = vpack.c.b16 %v2084, %v2080
        %v2129 = vpack.c.b16 %v2085, %v2081
        %v2130 = vpack.c.b16 %v2086, %v2082
        %v2131 = vpack.c.b16 %v2091, %v2087
        %v2132 = vpack.c.b16 %v2092, %v2088
        %v2133 = vpack.c.b16 %v2093, %v2089
        %v2134 = vpack.c.b16 %v2094, %v2090
        %v2135 = vpack.c.b16 %v2099, %v2095
        %v2136 = vpack.c.b16 %v2100, %v2096
        %v2137 = vpack.c.b16 %v2101, %v2097
        %v2138 = vpack.c.b16 %v2102, %v2098
        %v2139 = vpack.c.b16 %v2107, %v2103
        %v2140 = vpack.c.b16 %v2108, %v2104
        %v2141 = vpack.c.b16 %v2109, %v2105
        %v2142 = vpack.c.b16 %v2110, %v2106
        %2175 = vmatprep.subr.bf16.mxu0 %v2140
        %2176 = vmatpush1.bf16.msra.mxu0 %v2139
        %2177 = vmatprep.subr.bf16.mxu0 %v2136
        %2178 = vmatpush1.bf16.msra.mxu0 %v2135
        %2179 = vmatprep.subr.bf16.mxu0 %v2132
        %2180 = vmatpush1.bf16.msra.mxu0 %v2131
        %2181 = vmatprep.subr.bf16.mxu0 %v2128
        %2182 = vmatpush1.bf16.msra.mxu0 %v2127
        %2183 = vmatprep.subr.bf16.mxu0 %v2124
        %2184 = vmatpush1.bf16.msra.mxu0 %v2123
        %2185 = vmatprep.subr.bf16.mxu0 %v2120
        %2186 = vmatpush1.bf16.msra.mxu0 %v2119
        %2187 = vmatprep.subr.bf16.mxu0 %v2116
        %2188 = vmatpush1.bf16.msra.mxu0 %v2115
        %2189 = vmatprep.subr.bf16.mxu0 %v2112
        %2190 = vmatpush1.bf16.msra.mxu0 %v2111
        %2191 = vmatprep.subr.bf16.mxu0 0
        %2192 = vmatpush2.bf16.msra.mxu0 0
        %2193 = vmatprep.subr.bf16.mxu0 0
        %2194 = vmatpush2.bf16.msra.mxu0 0
        %2195 = vmatprep.subr.bf16.mxu0 0
        %2196 = vmatpush2.bf16.msra.mxu0 0
        %2197 = vmatprep.subr.bf16.mxu0 0
        %2198 = vmatpush2.bf16.msra.mxu0 0
        %2199 = vmatprep.subr.bf16.mxu0 0
        %2200 = vmatpush2.bf16.msra.mxu0 0
        %2201 = vmatprep.subr.bf16.mxu0 0
        %2202 = vmatpush2.bf16.msra.mxu0 0
        %2203 = vmatprep.subr.bf16.mxu0 0
        %2204 = vmatpush2.bf16.msra.mxu0 0
        %2205 = vmatprep.subr.bf16.mxu0 0
        %2206 = vmatpush2.bf16.msra.mxu0 0
        %2207 = vmatprep.mubr.bf16.mxu0 0
        %2208 = vmatmul.mubr.bf16.gmra.mxu0 %v1959
        %v2209 = vpop.f32.mrf.mxu0
        %v2210 = vadd.f32 %v1998, %v2209
        %v2211 = vpop.f32.mrf.mxu0
        %v2212 = vadd.f32 %v2002, %v2211
        %v2213 = vpop.f32.mrf.mxu0
        %v2214 = vadd.f32 %v1998, %v2213
        %v2215 = vpop.f32.mrf.mxu0
        %v2216 = vadd.f32 %v2002, %v2215
        %2217 = vmatprep.mubr.bf16.mxu0 0
        %2218 = vmatmul.mubr.bf16.gmra.mxu0 %v1960
        %v2219 = vpop.f32.mrf.mxu0
        %v2220 = vadd.f32 %v1998, %v2219
        %v2221 = vpop.f32.mrf.mxu0
        %v2222 = vadd.f32 %v2002, %v2221
        %v2223 = vpop.f32.mrf.mxu0
        %v2224 = vadd.f32 %v1998, %v2223
        %v2225 = vpop.f32.mrf.mxu0
        %v2226 = vadd.f32 %v2002, %v2225
        %2227 = vdwg.mxu0
        %2228 = vmatprep.subr.bf16.mxu0 %v2142
        %2229 = vmatpush1.bf16.msra.mxu0 %v2141
        %2230 = vmatprep.subr.bf16.mxu0 %v2138
        %2231 = vmatpush1.bf16.msra.mxu0 %v2137
        %2232 = vmatprep.subr.bf16.mxu0 %v2134
        %2233 = vmatpush1.bf16.msra.mxu0 %v2133
        %2234 = vmatprep.subr.bf16.mxu0 %v2130
        %2235 = vmatpush1.bf16.msra.mxu0 %v2129
        %2236 = vmatprep.subr.bf16.mxu0 %v2126
        %2237 = vmatpush1.bf16.msra.mxu0 %v2125
        %2238 = vmatprep.subr.bf16.mxu0 %v2122
        %2239 = vmatpush1.bf16.msra.mxu0 %v2121
        %2240 = vmatprep.subr.bf16.mxu0 %v2118
        %2241 = vmatpush1.bf16.msra.mxu0 %v2117
        %2242 = vmatprep.subr.bf16.mxu0 %v2114
        %2243 = vmatpush1.bf16.msra.mxu0 %v2113
        %2244 = vmatprep.subr.bf16.mxu0 0
        %2245 = vmatpush2.bf16.msra.mxu0 0
        %2246 = vmatprep.subr.bf16.mxu0 0
        %2247 = vmatpush2.bf16.msra.mxu0 0
        %2248 = vmatprep.subr.bf16.mxu0 0
        %2249 = vmatpush2.bf16.msra.mxu0 0
        %2250 = vmatprep.subr.bf16.mxu0 0
        %2251 = vmatpush2.bf16.msra.mxu0 0
        %2252 = vmatprep.subr.bf16.mxu0 0
        %2253 = vmatpush2.bf16.msra.mxu0 0
        %2254 = vmatprep.subr.bf16.mxu0 0
        %2255 = vmatpush2.bf16.msra.mxu0 0
        %2256 = vmatprep.subr.bf16.mxu0 0
        %2257 = vmatpush2.bf16.msra.mxu0 0
        %2258 = vmatprep.subr.bf16.mxu0 0
        %2259 = vmatpush2.bf16.msra.mxu0 0
        %2260 = vmatprep.mubr.bf16.mxu0 0
        %2261 = vmatmul.mubr.bf16.gmra.mxu0 %v1959
        %v2262 = vpop.f32.mrf.mxu0
        %v2263 = vadd.f32 %v2006, %v2262
        %v2264 = vpop.f32.mrf.mxu0
        %v2265 = vadd.f32 %v2010, %v2264
        %v2266 = vpop.f32.mrf.mxu0
        %v2267 = vadd.f32 %v2006, %v2266
        %v2268 = vpop.f32.mrf.mxu0
        %v2269 = vadd.f32 %v2010, %v2268
        %2270 = vmatprep.mubr.bf16.mxu0 0
        %2271 = vmatmul.mubr.bf16.gmra.mxu0 %v1960
        %v2272 = vpop.f32.mrf.mxu0
        %v2273 = vadd.f32 %v2006, %v2272
        %v2274 = vpop.f32.mrf.mxu0
        %v2275 = vadd.f32 %v2010, %v2274
        %v2276 = vpop.f32.mrf.mxu0
        %v2277 = vadd.f32 %v2006, %v2276
        %v2278 = vpop.f32.mrf.mxu0
        %v2279 = vadd.f32 %v2010, %v2278
        %2280 = vdwg.mxu0
        %v2281 = vmax.f32 %v2210, 0.0
        %v2282 = vmax.f32 %v2212, 0.0
        %v2283 = vmax.f32 %v2263, 0.0
        %v2284 = vmax.f32 %v2265, 0.0
        %v2285 = vmax.f32 %v2214, 0.0
        %v2286 = vmax.f32 %v2216, 0.0
        %v2287 = vmax.f32 %v2267, 0.0
        %v2288 = vmax.f32 %v2269, 0.0
        %v2289 = vmax.f32 %v2220, 0.0
        %v2290 = vmax.f32 %v2222, 0.0
        %v2291 = vmax.f32 %v2273, 0.0
        %v2292 = vmax.f32 %v2275, 0.0
        %v2293 = vmax.f32 %v2224, 0.0
        %v2294 = vmax.f32 %v2226, 0.0
        %v2295 = vmax.f32 %v2277, 0.0
        %v2296 = vmax.f32 %v2279, 0.0
        %v2297 = vpack.c.bf16 %v2285, %v2281
        %v2298 = vpack.c.bf16 %v2286, %v2282
        %v2299 = vpack.c.bf16 %v2287, %v2283
        %v2300 = vpack.c.bf16 %v2288, %v2284
        %v2301 = vpack.c.bf16 %v2293, %v2289
        %v2302 = vpack.c.bf16 %v2294, %v2290
        %v2303 = vpack.c.bf16 %v2295, %v2291
        %v2304 = vpack.c.bf16 %v2296, %v2292
        %v2305 = vld [vmem:[#allocation12] sm:$0xf]
        %v2306 = vld [vmem:[#allocation12 + $0x4] sm:$0xf]
        %v2307 = vld [vmem:[#allocation12 + $0x8] sm:$0xf]
        %v2308 = vld [vmem:[#allocation12 + $0xc] sm:$0xf]
        %v2309 = vld [vmem:[#allocation12 + $0x10] sm:$0xf]
        %v2310 = vld [vmem:[#allocation12 + $0x14] sm:$0xf]
        %v2311 = vld [vmem:[#allocation12 + $0x18] sm:$0xf]
        %v2312 = vld [vmem:[#allocation12 + $0x1c] sm:$0xf]
        %v2313 = vld [vmem:[#allocation12 + $0x20] sm:$0xf]
        %v2314 = vld [vmem:[#allocation12 + $0x24] sm:$0xf]
        %v2315 = vld [vmem:[#allocation12 + $0x28] sm:$0xf]
        %v2316 = vld [vmem:[#allocation12 + $0x2c] sm:$0xf]
        %v2317 = vld [vmem:[#allocation12 + $0x30] sm:$0xf]
        %v2318 = vld [vmem:[#allocation12 + $0x34] sm:$0xf]
        %v2319 = vld [vmem:[#allocation12 + $0x38] sm:$0xf]
        %v2320 = vld [vmem:[#allocation12 + $0x3c] sm:$0xf]
        %v2321 = vld [vmem:[#allocation12 + $0x40] sm:$0xf]
        %v2322 = vld [vmem:[#allocation12 + $0x44] sm:$0xf]
        %v2323 = vld [vmem:[#allocation12 + $0x48] sm:$0xf]
        %v2324 = vld [vmem:[#allocation12 + $0x4c] sm:$0xf]
        %v2325 = vld [vmem:[#allocation12 + $0x50] sm:$0xf]
        %v2326 = vld [vmem:[#allocation12 + $0x54] sm:$0xf]
        %v2327 = vld [vmem:[#allocation12 + $0x58] sm:$0xf]
        %v2328 = vld [vmem:[#allocation12 + $0x5c] sm:$0xf]
        %v2329 = vld [vmem:[#allocation12 + $0x60] sm:$0xf]
        %v2330 = vld [vmem:[#allocation12 + $0x64] sm:$0xf]
        %v2331 = vld [vmem:[#allocation12 + $0x68] sm:$0xf]
        %v2332 = vld [vmem:[#allocation12 + $0x6c] sm:$0xf]
        %v2333 = vld [vmem:[#allocation12 + $0x70] sm:$0xf]
        %v2334 = vld [vmem:[#allocation12 + $0x74] sm:$0xf]
        %v2335 = vld [vmem:[#allocation12 + $0x78] sm:$0xf]
        %v2336 = vld [vmem:[#allocation12 + $0x7c] sm:$0xf]
        %v2337 = vld [vmem:[#allocation12 + $0x80] sm:$0xf]
        %v2338 = vld [vmem:[#allocation12 + $0x84] sm:$0xf]
        %v2339 = vld [vmem:[#allocation12 + $0x88] sm:$0xf]
        %v2340 = vld [vmem:[#allocation12 + $0x8c] sm:$0xf]
        %v2341 = vld [vmem:[#allocation12 + $0x90] sm:$0xf]
        %v2342 = vld [vmem:[#allocation12 + $0x94] sm:$0xf]
        %v2343 = vld [vmem:[#allocation12 + $0x98] sm:$0xf]
        %v2344 = vld [vmem:[#allocation12 + $0x9c] sm:$0xf]
        %v2345 = vld [vmem:[#allocation12 + $0xa0] sm:$0xf]
        %v2346 = vld [vmem:[#allocation12 + $0xa4] sm:$0xf]
        %v2347 = vld [vmem:[#allocation12 + $0xa8] sm:$0xf]
        %v2348 = vld [vmem:[#allocation12 + $0xac] sm:$0xf]
        %v2349 = vld [vmem:[#allocation12 + $0xb0] sm:$0xf]
        %v2350 = vld [vmem:[#allocation12 + $0xb4] sm:$0xf]
        %v2351 = vld [vmem:[#allocation12 + $0xb8] sm:$0xf]
        %v2352 = vld [vmem:[#allocation12 + $0xbc] sm:$0xf]
        %v2353 = vld [vmem:[#allocation12 + $0xc0] sm:$0xf]
        %v2354 = vld [vmem:[#allocation12 + $0xc4] sm:$0xf]
        %v2355 = vld [vmem:[#allocation12 + $0xc8] sm:$0xf]
        %v2356 = vld [vmem:[#allocation12 + $0xcc] sm:$0xf]
        %v2357 = vld [vmem:[#allocation12 + $0xd0] sm:$0xf]
        %v2358 = vld [vmem:[#allocation12 + $0xd4] sm:$0xf]
        %v2359 = vld [vmem:[#allocation12 + $0xd8] sm:$0xf]
        %v2360 = vld [vmem:[#allocation12 + $0xdc] sm:$0xf]
        %v2361 = vld [vmem:[#allocation12 + $0xe0] sm:$0xf]
        %v2362 = vld [vmem:[#allocation12 + $0xe4] sm:$0xf]
        %v2363 = vld [vmem:[#allocation12 + $0xe8] sm:$0xf]
        %v2364 = vld [vmem:[#allocation12 + $0xec] sm:$0xf]
        %v2365 = vld [vmem:[#allocation12 + $0xf0] sm:$0xf]
        %v2366 = vld [vmem:[#allocation12 + $0xf4] sm:$0xf]
        %v2367 = vld [vmem:[#allocation12 + $0xf8] sm:$0xf]
        %v2368 = vld [vmem:[#allocation12 + $0xfc] sm:$0xf]
        %v2369 = vlaneseq
        %v2370 = vshrl.u32 %v2369, 7
        %v2371 = vsub.s32 1, %v2370
        %v2372 = vrot.slane %v399, %v2371
        %v2437 = vunpack.c.l.b16 %v2305
        %v2438 = vunpack.c.l.b16 %v2306
        %v2439 = vunpack.c.l.b16 %v2307
        %v2440 = vunpack.c.l.b16 %v2308
        %v2441 = vunpack.c.l.b16 %v2309
        %v2442 = vunpack.c.l.b16 %v2310
        %v2443 = vunpack.c.l.b16 %v2311
        %v2444 = vunpack.c.l.b16 %v2312
        %v2445 = vunpack.c.l.b16 %v2313
        %v2446 = vunpack.c.l.b16 %v2314
        %v2447 = vunpack.c.l.b16 %v2315
        %v2448 = vunpack.c.l.b16 %v2316
        %v2449 = vunpack.c.l.b16 %v2317
        %v2450 = vunpack.c.l.b16 %v2318
        %v2451 = vunpack.c.l.b16 %v2319
        %v2452 = vunpack.c.l.b16 %v2320
        %v2453 = vunpack.c.l.b16 %v2321
        %v2454 = vunpack.c.l.b16 %v2322
        %v2455 = vunpack.c.l.b16 %v2323
        %v2456 = vunpack.c.l.b16 %v2324
        %v2457 = vunpack.c.l.b16 %v2325
        %v2458 = vunpack.c.l.b16 %v2326
        %v2459 = vunpack.c.l.b16 %v2327
        %v2460 = vunpack.c.l.b16 %v2328
        %v2461 = vunpack.c.l.b16 %v2329
        %v2462 = vunpack.c.l.b16 %v2330
        %v2463 = vunpack.c.l.b16 %v2331
        %v2464 = vunpack.c.l.b16 %v2332
        %v2465 = vunpack.c.l.b16 %v2333
        %v2466 = vunpack.c.l.b16 %v2334
        %v2467 = vunpack.c.l.b16 %v2335
        %v2468 = vunpack.c.l.b16 %v2336
        %v2469 = vunpack.c.l.b16 %v2337
        %v2470 = vunpack.c.l.b16 %v2338
        %v2471 = vunpack.c.l.b16 %v2339
        %v2472 = vunpack.c.l.b16 %v2340
        %v2473 = vunpack.c.l.b16 %v2341
        %v2474 = vunpack.c.l.b16 %v2342
        %v2475 = vunpack.c.l.b16 %v2343
        %v2476 = vunpack.c.l.b16 %v2344
        %v2477 = vunpack.c.l.b16 %v2345
        %v2478 = vunpack.c.l.b16 %v2346
        %v2479 = vunpack.c.l.b16 %v2347
        %v2480 = vunpack.c.l.b16 %v2348
        %v2481 = vunpack.c.l.b16 %v2349
        %v2482 = vunpack.c.l.b16 %v2350
        %v2483 = vunpack.c.l.b16 %v2351
        %v2484 = vunpack.c.l.b16 %v2352
        %v2485 = vunpack.c.l.b16 %v2353
        %v2486 = vunpack.c.l.b16 %v2354
        %v2487 = vunpack.c.l.b16 %v2355
        %v2488 = vunpack.c.l.b16 %v2356
        %v2489 = vunpack.c.l.b16 %v2357
        %v2490 = vunpack.c.l.b16 %v2358
        %v2491 = vunpack.c.l.b16 %v2359
        %v2492 = vunpack.c.l.b16 %v2360
        %v2493 = vunpack.c.l.b16 %v2361
        %v2494 = vunpack.c.l.b16 %v2362
        %v2495 = vunpack.c.l.b16 %v2363
        %v2496 = vunpack.c.l.b16 %v2364
        %v2497 = vunpack.c.l.b16 %v2365
        %v2498 = vunpack.c.l.b16 %v2366
        %v2499 = vunpack.c.l.b16 %v2367
        %v2500 = vunpack.c.l.b16 %v2368
        %v2501 = vpack.c.b16 %v2438, %v2437
        %v2502 = vpack.c.b16 %v2440, %v2439
        %v2503 = vpack.c.b16 %v2442, %v2441
        %v2504 = vpack.c.b16 %v2444, %v2443
        %v2505 = vpack.c.b16 %v2446, %v2445
        %v2506 = vpack.c.b16 %v2448, %v2447
        %v2507 = vpack.c.b16 %v2450, %v2449
        %v2508 = vpack.c.b16 %v2452, %v2451
        %v2509 = vpack.c.b16 %v2454, %v2453
        %v2510 = vpack.c.b16 %v2456, %v2455
        %v2511 = vpack.c.b16 %v2458, %v2457
        %v2512 = vpack.c.b16 %v2460, %v2459
        %v2513 = vpack.c.b16 %v2462, %v2461
        %v2514 = vpack.c.b16 %v2464, %v2463
        %v2515 = vpack.c.b16 %v2466, %v2465
        %v2516 = vpack.c.b16 %v2468, %v2467
        %v2517 = vpack.c.b16 %v2470, %v2469
        %v2518 = vpack.c.b16 %v2472, %v2471
        %v2519 = vpack.c.b16 %v2474, %v2473
        %v2520 = vpack.c.b16 %v2476, %v2475
        %v2521 = vpack.c.b16 %v2478, %v2477
        %v2522 = vpack.c.b16 %v2480, %v2479
        %v2523 = vpack.c.b16 %v2482, %v2481
        %v2524 = vpack.c.b16 %v2484, %v2483
        %v2525 = vpack.c.b16 %v2486, %v2485
        %v2526 = vpack.c.b16 %v2488, %v2487
        %v2527 = vpack.c.b16 %v2490, %v2489
        %v2528 = vpack.c.b16 %v2492, %v2491
        %v2529 = vpack.c.b16 %v2494, %v2493
        %v2530 = vpack.c.b16 %v2496, %v2495
        %v2531 = vpack.c.b16 %v2498, %v2497
        %v2532 = vpack.c.b16 %v2500, %v2499
        %2565 = vmatprep.subr.bf16.mxu0 0
        %2566 = vmatpush1.bf16.msra.mxu0 %v2508
        %2567 = vmatprep.subr.bf16.mxu0 0
        %2568 = vmatpush1.bf16.msra.mxu0 %v2507
        %2569 = vmatprep.subr.bf16.mxu0 0
        %2570 = vmatpush1.bf16.msra.mxu0 %v2506
        %2571 = vmatprep.subr.bf16.mxu0 0
        %2572 = vmatpush1.bf16.msra.mxu0 %v2505
        %2573 = vmatprep.subr.bf16.mxu0 0
        %2574 = vmatpush1.bf16.msra.mxu0 %v2504
        %2575 = vmatprep.subr.bf16.mxu0 0
        %2576 = vmatpush1.bf16.msra.mxu0 %v2503
        %2577 = vmatprep.subr.bf16.mxu0 0
        %2578 = vmatpush1.bf16.msra.mxu0 %v2502
        %2579 = vmatprep.subr.bf16.mxu0 0
        %2580 = vmatpush1.bf16.msra.mxu0 %v2501
        %2581 = vmatprep.subr.bf16.mxu0 0
        %2582 = vmatpush2.bf16.msra.mxu0 %v2516
        %2583 = vmatprep.subr.bf16.mxu0 0
        %2584 = vmatpush2.bf16.msra.mxu0 %v2515
        %2585 = vmatprep.subr.bf16.mxu0 0
        %2586 = vmatpush2.bf16.msra.mxu0 %v2514
        %2587 = vmatprep.subr.bf16.mxu0 0
        %2588 = vmatpush2.bf16.msra.mxu0 %v2513
        %2589 = vmatprep.subr.bf16.mxu0 0
        %2590 = vmatpush2.bf16.msra.mxu0 %v2512
        %2591 = vmatprep.subr.bf16.mxu0 0
        %2592 = vmatpush2.bf16.msra.mxu0 %v2511
        %2593 = vmatprep.subr.bf16.mxu0 0
        %2594 = vmatpush2.bf16.msra.mxu0 %v2510
        %2595 = vmatprep.subr.bf16.mxu0 0
        %2596 = vmatpush2.bf16.msra.mxu0 %v2509
        %2597 = vmatprep.mubr.bf16.mxu0 %v2298
        %2598 = vmatmul.mubr.bf16.gmra.mxu0 %v2297
        %v2599 = vpop.f32.mrf.mxu0
        %v2600 = vadd.f32 %v2372, %v2599
        %v2601 = vpop.f32.mrf.mxu0
        %v2602 = vpop.f32.mrf.mxu0
        %v2603 = vadd.f32 %v2372, %v2602
        %v2604 = vpop.f32.mrf.mxu0
        %2605 = vmatprep.mubr.bf16.mxu0 %v2302
        %2606 = vmatmul.mubr.bf16.gmra.mxu0 %v2301
        %v2607 = vpop.f32.mrf.mxu0
        %v2608 = vadd.f32 %v2372, %v2607
        %v2609 = vpop.f32.mrf.mxu0
        %v2610 = vpop.f32.mrf.mxu0
        %v2611 = vadd.f32 %v2372, %v2610
        %v2612 = vpop.f32.mrf.mxu0
        %2613 = vdwg.mxu0
        %2614 = vmatprep.subr.bf16.mxu0 0
        %2615 = vmatpush1.bf16.msra.mxu0 %v2524
        %2616 = vmatprep.subr.bf16.mxu0 0
        %2617 = vmatpush1.bf16.msra.mxu0 %v2523
        %2618 = vmatprep.subr.bf16.mxu0 0
        %2619 = vmatpush1.bf16.msra.mxu0 %v2522
        %2620 = vmatprep.subr.bf16.mxu0 0
        %2621 = vmatpush1.bf16.msra.mxu0 %v2521
        %2622 = vmatprep.subr.bf16.mxu0 0
        %2623 = vmatpush1.bf16.msra.mxu0 %v2520
        %2624 = vmatprep.subr.bf16.mxu0 0
        %2625 = vmatpush1.bf16.msra.mxu0 %v2519
        %2626 = vmatprep.subr.bf16.mxu0 0
        %2627 = vmatpush1.bf16.msra.mxu0 %v2518
        %2628 = vmatprep.subr.bf16.mxu0 0
        %2629 = vmatpush1.bf16.msra.mxu0 %v2517
        %2630 = vmatprep.subr.bf16.mxu0 0
        %2631 = vmatpush2.bf16.msra.mxu0 %v2532
        %2632 = vmatprep.subr.bf16.mxu0 0
        %2633 = vmatpush2.bf16.msra.mxu0 %v2531
        %2634 = vmatprep.subr.bf16.mxu0 0
        %2635 = vmatpush2.bf16.msra.mxu0 %v2530
        %2636 = vmatprep.subr.bf16.mxu0 0
        %2637 = vmatpush2.bf16.msra.mxu0 %v2529
        %2638 = vmatprep.subr.bf16.mxu0 0
        %2639 = vmatpush2.bf16.msra.mxu0 %v2528
        %2640 = vmatprep.subr.bf16.mxu0 0
        %2641 = vmatpush2.bf16.msra.mxu0 %v2527
        %2642 = vmatprep.subr.bf16.mxu0 0
        %2643 = vmatpush2.bf16.msra.mxu0 %v2526
        %2644 = vmatprep.subr.bf16.mxu0 0
        %2645 = vmatpush2.bf16.msra.mxu0 %v2525
        %2646 = vmatprep.mubr.bf16.mxu0 %v2300
        %2647 = vmatmul.mubr.bf16.gmra.mxu0 %v2299
        %v2648 = vpop.f32.mrf.mxu0
        %v2649 = vadd.f32 %v2600, %v2648
        %v2650 = vpop.f32.mrf.mxu0
        %v2651 = vpop.f32.mrf.mxu0
        %v2652 = vadd.f32 %v2603, %v2651
        %v2653 = vpop.f32.mrf.mxu0
        %2654 = vmatprep.mubr.bf16.mxu0 %v2304
        %2655 = vmatmul.mubr.bf16.gmra.mxu0 %v2303
        %v2656 = vpop.f32.mrf.mxu0
        %v2657 = vadd.f32 %v2608, %v2656
        %v2658 = vpop.f32.mrf.mxu0
        %v2659 = vpop.f32.mrf.mxu0
        %v2660 = vadd.f32 %v2611, %v2659
        %v2661 = vpop.f32.mrf.mxu0
        %2662 = vdwg.mxu0
        %v2663 = vadd.f32 %v2649, %v1955
        %v2664 = vadd.f32 %v2652, %v1956
        %v2665 = vadd.f32 %v2657, %v1957
        %v2666 = vadd.f32 %v2660, %v1958
        %2667 = vadd.xlane.f32.xlu0 %v2663
        %v2668 = vpop.xlane.xlu0 %2667
        %2669 = vadd.xlane.f32.xlu0 %v2664
        %v2670 = vpop.xlane.xlu0 %2669
        %2671 = vadd.xlane.f32.xlu0 %v2665
        %v2672 = vpop.xlane.xlu0 %2671
        %2673 = vadd.xlane.f32.xlu0 %v2666
        %v2674 = vpop.xlane.xlu0 %2673
        %v2675 = vmul.f32 %v2668, %v1906
        %v2676 = vmul.f32 %v2670, %v1906
        %v2677 = vmul.f32 %v2672, %v1906
        %v2678 = vmul.f32 %v2674, %v1906
        %v2679 = vsub.f32 %v2663, %v2675
        %v2680 = vsub.f32 %v2664, %v2676
        %v2681 = vsub.f32 %v2665, %v2677
        %v2682 = vsub.f32 %v2666, %v2678
        %v2683 = vmul.f32 %v2679, %v2679
        %v2684 = vmul.f32 %v2680, %v2680
        %v2685 = vmul.f32 %v2681, %v2681
        %v2686 = vmul.f32 %v2682, %v2682
        %2687 = vadd.xlane.f32.xlu0 %v2683
        %v2688 = vpop.xlane.xlu0 %2687
        %2689 = vadd.xlane.f32.xlu0 %v2684
        %v2690 = vpop.xlane.xlu0 %2689
        %2691 = vadd.xlane.f32.xlu0 %v2685
        %v2692 = vpop.xlane.xlu0 %2691
        %2693 = vadd.xlane.f32.xlu0 %v2686
        %v2694 = vpop.xlane.xlu0 %2693
        %v2695 = vmul.f32 %v2688, %v1906
        %v2696 = vmul.f32 %v2690, %v1906
        %v2697 = vmul.f32 %v2692, %v1906
        %v2698 = vmul.f32 %v2694, %v1906
        %v2699 = vadd.f32 %v2695, 1e-05
        %v2700 = vadd.f32 %v2696, 1e-05
        %v2701 = vadd.f32 %v2697, 1e-05
        %v2702 = vadd.f32 %v2698, 1e-05
        %v2703 = vrsqrt.pop %v2699
        %v2704 = vrsqrt.pop %v2700
        %v2705 = vrsqrt.pop %v2701
        %v2706 = vrsqrt.pop %v2702
        %v2707 = vmul.f32 %v2679, %v2703
        %v2708 = vmul.f32 %v2680, %v2704
        %v2709 = vmul.f32 %v2681, %v2705
        %v2710 = vmul.f32 %v2682, %v2706
        %v2711 = vlaneseq
        %v2712 = vshrl.u32 %v2711, 7
        %v2713 = vsub.s32 4, %v2712
        %v2714 = vrot.slane %v399, %v2713
        %v2715 = vmul.f32 %v2707, %v2714
        %v2716 = vmul.f32 %v2708, %v2714
        %v2717 = vmul.f32 %v2709, %v2714
        %v2718 = vmul.f32 %v2710, %v2714
        %v2719 = vlaneseq
        %v2720 = vshrl.u32 %v2719, 7
        %v2721 = vsub.s32 5, %v2720
        %v2722 = vrot.slane %v399, %v2721
        %v2723 = vadd.f32 %v2715, %v2722
        %v2724 = vadd.f32 %v2716, %v2722
        %v2725 = vadd.f32 %v2717, %v2722
        %v2726 = vadd.f32 %v2718, %v2722
        %2727 = vst [vmem:[%s395] sm:$0xff] %v2723
        %2728 = vst [vmem:[%s395 + $0x8] sm:$0xff] %v2724
        %2729 = vst [vmem:[%s395 + $0x10] sm:$0xff] %v2725
        %2730 = vst [vmem:[%s395 + $0x18] sm:$0xff] %v2726
        %s2731 = sand.u32 %s209, 1
        %s2732 = scalar_lea.sflag [#allocation5], %s2731
        %s2733 = sand.u32 %s209, 1
        %s2734 = smul.addr %s2733, 32
        %s2735 = scalar_lea.vmem [#allocation14], %s2734
        // Predicated region
        $region77: #{tpu_custom_call.1} parent=51 // pred_check
          %p2736 = pneg %p219
        $region78: #{tpu_custom_call.1} parent=51 // pred_check_branch
          %2738 = sbr.rel (%p2736) target = $region80
        $region79: #{tpu_custom_call.1} parent=51 // pred_region
          %s2739 = smul.u32 2, %s28
          %s2741 = ssub.s32 512, 512
          %2742 = vsyncadd %s2732, %s2741
          %s2743 = smul.addr %s2739, 2
          %s2744 = smul.addr %s2743, 128
          %s2745 = scalar_lea.hbm %s8, %s2744
          %s2746 = sshll.u32 %s2735, 4
          %s2747 = int_to_ptr.vmem [resolvable:$true] %s2746
          %2752 = dma.vmem_to_hbm [thread:$0]  %s2747, 512, %s2745, %s2732, 128, 128, 8
        $region80: #{tpu_custom_call.1} parent=51 // pred_fallthru
          _
      $region52: #{tpu_custom_call.1} parent=5 // pred_fallthru
        _
      %p2753 = scmp.le.s32.totalorder 2, %s23
      // Predicated region
      $region81: #{tpu_custom_call.1} parent=5 // pred_check
        %p2754 = pneg %p2753
      $region82: #{tpu_custom_call.1} parent=5 // pred_check_branch
        %2756 = sbr.rel (%p2754) target = $region84
      $region83: #{tpu_custom_call.1} parent=5 // pred_region
        %s2757 = ssub.s32 %s23, 2
        // Predicated region
        $region85: #{tpu_custom_call.1} parent=83 // pred_check
          %p2758 = pneg %p225
        $region86: #{tpu_custom_call.1} parent=83 // pred_check_branch
          %2760 = sbr.rel (%p2758) target = $region88
        $region87: #{tpu_custom_call.1} parent=83 // pred_region
          %s2761 = sand.u32 %s210, 1
          %s2762 = scalar_lea.sflag [#allocation5], %s2761
          %s2763 = sand.u32 %s210, 1
          %s2764 = smul.addr %s2763, 32
          %s2765 = scalar_lea.vmem [#allocation14], %s2764
          %2766 = dma.done %s2762, 512
        $region88: #{tpu_custom_call.1} parent=83 // pred_fallthru
          _
      $region84: #{tpu_custom_call.1} parent=5 // pred_fallthru
        _
    $region6: #{tpu_custom_call.1} parent=1 // loop_footer
      %s27 = sadd.s32 1, %s23
    $region7: #{tpu_custom_call.1} parent=1 // loop_footer_branch
      %22 = sbr.rel target = $region3
    $region8: #{tpu_custom_call.1} parent=1 // loop_exit
      _
    %2767 = vsyncpa [#allocation4], 1
    %s2768 = scalar_lea.sflag [#allocation4], 1
    %2769 = vsyncpa %s2768, 1
    %2770 = vsyncpa [#allocation7], 1
    %2771 = vsyncpa [#allocation10], 1
    %2772 = vsyncpa [#allocation13], 1
    %2773 = vsyncpa [#allocation5], 1
    %s2774 = scalar_lea.sflag [#allocation5], 1
    %2775 = vsyncpa %s2774, 1

</llo_original>
